<compile_context>
chip_gen: v5e
topology: v5e:2x2
jax: 0.10.0
libtpu: 0.0.40
codegen_flags: <defaults>
</compile_context>

<pallas_src>
from types import SimpleNamespace

import jax
import jax.numpy as jnp
import numpy as np
from jax.experimental import pallas as pl
from jax.experimental.pallas import tpu as pltpu


# ----------------------------- Pallas kernel --------------------------------
def _pose_triple_sse_kernel(sup1_ref, sup2_ref, sup3_ref, sup_gt_ref, sup_w_ref,
                            c1_ref, c2_ref, ce_ref, t2_ref, t1_ref, te_ref,
                            uw12_ref, uwe_ref,
                            pose_out_ref, cons_out_ref,
                            pose_acc_ref, cons_acc_ref):
    step = pl.program_id(1)

    @pl.when(step == 0)
    def _init():
        pose_acc_ref[...] = jnp.zeros_like(pose_acc_ref)
        cons_acc_ref[...] = jnp.zeros_like(cons_acc_ref)

    def wsq(p_ref, g_ref, w_ref):
        # (pred*w - gt*w)^2 == ((pred - gt) * w)^2 ; accumulate in f32.
        d = p_ref[...].astype(jnp.float32) - g_ref[...].astype(jnp.float32)
        d = d * w_ref[...].astype(jnp.float32)
        return d * d

    # Hot loop: pure VPU elementwise accumulation, no cross-lane reduce.
    pose_acc_ref[...] += (wsq(sup1_ref, sup_gt_ref, sup_w_ref)
                          + wsq(sup2_ref, sup_gt_ref, sup_w_ref)
                          + wsq(sup3_ref, sup_gt_ref, sup_w_ref))
    cons_acc_ref[...] += (wsq(c1_ref, t2_ref, uw12_ref)
                          + wsq(c2_ref, t1_ref, uw12_ref)
                          + wsq(ce_ref, te_ref, uwe_ref))

    # Epilogue: single XLU reduce per split, lane-dense (1, 8, 128) store.
    @pl.when(step == pl.num_programs(1) - 1)
    def _finalize():
        pose_out_ref[...] = jnp.full(pose_out_ref.shape,
                                     jnp.sum(pose_acc_ref[...]), jnp.float32)
        cons_out_ref[...] = jnp.full(cons_out_ref.shape,
                                     jnp.sum(cons_acc_ref[...]), jnp.float32)


# ------------------------------ tiling helper --------------------------------
_VMEM_INPUT_BUDGET = 20 << 20  # conservative: leaves headroom on v7x (64 MiB phys)


def _pick_tiling(bj_padded, hw, hm_bytes):
    """Choose (tile_rows, steps_per_split, splits) for grid=(splits, steps)."""
    # Per-row VMEM cost: 11 heatmap streams double-buffered + 2 f32 accumulators.
    row_cost = 2 * 11 * hw * hm_bytes + 2 * hw * 4 + 2 * 3 * 4
    max_rows = max(8, _VMEM_INPUT_BUDGET // row_cost)
    # Prefer >= ~4 reduction steps so DMA pipelines against the VPU work.
    target = int(max(8, min(max_rows, max(8, bj_padded // 4))))
    tile = 8
    cand = 8
    while cand <= min(target, bj_padded):
        if bj_padded % cand == 0:
            tile = cand
        cand += 8
    num_tiles = bj_padded // tile
    splits = 2 if (num_tiles >= 2 and num_tiles % 2 == 0) else 1
    return tile, num_tiles // splits, splits


def _sse_sums(sup1, sup2, sup3, sup_gt, sup_w,
              c1, c2, ce, t2, t1, te, uw12, uwe):
    """Returns (sum of 3 supervised weighted SSEs, sum of 3 consistency weighted SSEs)."""
    args = (sup1, sup2, sup3, sup_gt, sup_w, c1, c2, ce, t2, t1, te, uw12, uwe)
    bj, hw = sup1.shape

    # Pad rows to a multiple of 8 (zero weights -> zero contribution).
    bj_padded = -(-bj // 8) * 8
    if bj_padded != bj:
        pad = bj_padded - bj
        args = tuple(jnp.pad(a, ((0, pad), (0, 0))) for a in args)

    hm_bytes = max(a.dtype.itemsize for a in args if a.shape[1] == hw)
    tile, steps, splits = _pick_tiling(bj_padded, hw, hm_bytes)

    def row_map(c, i):
        return (c * steps + i, 0)

    in_specs = [pl.BlockSpec((tile, a.shape[1]), row_map) for a in args]
    out_spec = pl.BlockSpec((1, 8, 128), lambda c, i: (c, 0, 0))

    vmem_needed = (2 * 11 * tile * hw * hm_bytes   # double-buffered heatmap inputs
                   + 2 * 3 * tile * 4              # double-buffered weight inputs
                   + 2 * tile * hw * 4             # f32 accumulators
                   + 2 * 2 * 8 * 128 * 4)          # output blocks
    vmem_limit = int(min(60 << 20, max(32 << 20, vmem_needed + (8 << 20))))

    pose_p, cons_p = pl.pallas_call(
        _pose_triple_sse_kernel,
        out_shape=(jax.ShapeDtypeStruct((splits, 8, 128), jnp.float32),
                   jax.ShapeDtypeStruct((splits, 8, 128), jnp.float32)),
        grid_spec=pltpu.PrefetchScalarGridSpec(
            num_scalar_prefetch=0,
            grid=(splits, steps),
            in_specs=in_specs,
            out_specs=(out_spec, out_spec),
            scratch_shapes=[pltpu.VMEM((tile, hw), jnp.float32),
                            pltpu.VMEM((tile, hw), jnp.float32)]),
        compiler_params=pltpu.CompilerParams(
            dimension_semantics=("parallel", "arbitrary"),
            vmem_limit_bytes=vmem_limit),
    )(*args)

    return jnp.sum(pose_p[:, 0, 0]), jnp.sum(cons_p[:, 0, 0])


# ------------------------------ JAX wrapper ---------------------------------
def _flat_hm(x):
    b, j, h, w = x.shape
    return x.reshape(b * j, h * w)  # keep dtype; kernel casts to f32 internally


def _flat_w(w):
    b, j, _ = w.shape
    return w.reshape(b * j, 1)


def pose_triple_loss(output, target, target_weight, meta, cfg):
    """Mirrors PoseTripleLoss.forward (list-valued target path)."""
    sup_target, unsup_target = target
    sup_tw, unsup_tw = target_weight
    del meta, unsup_target  # not used by the loss math

    (sup_ht1, sup_ht2, sup_ht3, _unsup_ht1, _unsup_ht2, _ensemble_unsup_ht,
     unsup_ht_trans1, unsup_ht_trans2, unsup_ht_trans_ensemble,
     cons_ht1, cons_ht2, cons_ht_ensemble,
     kp_dist_mask, kp_dist_uncertainty_k, score_mask, score_diff_k,
     _out_dic) = output

    B, J, H, W = sup_target.shape

    # ---- unsupervised weight modification (tiny (B, J, 1) elementwise glue) ----
    if (cfg.kp_dist_and_score_both_satisfy and cfg.kp_pixel_dist_filter
            and cfg.score_filter):
        uw = unsup_tw * jnp.logical_or(kp_dist_mask, score_mask).astype(unsup_tw.dtype)
        if cfg.score_diff_reweight:
            uw = uw * score_diff_k
        if cfg.kp_pixel_dist_diff_reweight:
            uw = uw * kp_dist_uncertainty_k
        uw12, uwe = uw, uw
    else:
        uw = unsup_tw
        if cfg.score_filter:
            uw = uw * score_mask.astype(uw.dtype)
        if cfg.score_diff_reweight:
            uw = uw * score_diff_k
        uw12 = uw  # weight used for cons_ht1 / cons_ht2 terms
        if cfg.kp_pixel_dist_filter:
            uw = uw * kp_dist_mask.astype(uw.dtype)
        if cfg.kp_pixel_dist_diff_reweight:
            uw = uw * kp_dist_uncertainty_k
        uwe = uw  # weight used for the ensemble consistency term

    # ---- hot path: six weighted SSE reductions inside one gridded Pallas kernel ----
    sse_pose, sse_cons = _sse_sums(
        _flat_hm(sup_ht1), _flat_hm(sup_ht2), _flat_hm(sup_ht3),
        _flat_hm(sup_target), _flat_w(sup_tw),
        _flat_hm(cons_ht1), _flat_hm(cons_ht2), _flat_hm(cons_ht_ensemble),
        _flat_hm(unsup_ht_trans2), _flat_hm(unsup_ht_trans1),
        _flat_hm(unsup_ht_trans_ensemble),
        _flat_w(uw12), _flat_w(uwe))

    # JointsMSE = 0.5/(J*B*HW) * weighted_SSE ; loss_pose has an extra 0.5 factor.
    inv = 1.0 / float(J * B * H * W)
    loss_pose = 0.5 * 0.5 * inv * sse_pose
    loss_cons = 0.5 * inv * sse_cons
    loss = loss_pose + loss_cons

    loss_dic = {'loss_pose': loss_pose, 'loss_cons': loss_cons}
    # TODO(synk): PyTorch moves pseudo_target to CPU (.cpu()); here we only detach.
    pseudo_target = [jax.lax.stop_gradient(unsup_ht_trans2),
                     jax.lax.stop_gradient(unsup_ht_trans1),
                     jax.lax.stop_gradient(unsup_ht_trans_ensemble)]
    return loss, loss_dic, pseudo_target


# --------------------------- pure-JAX reference ------------------------------
def _joints_mse_ref(out, tgt, tw):
    B, J, H, W = out.shape
    p = out.reshape(B, J, -1)
    g = tgt.reshape(B, J, -1)
    loss = 0.0
    for j in range(J):
        pj = p[:, j] * tw[:, j]
        gj = g[:, j] * tw[:, j]
        loss = loss + 0.5 * jnp.mean((pj - gj) ** 2)
    return loss / J


# --------------------------------- main --------------------------------------
if __name__ == "__main__":
    cfg = SimpleNamespace(
        MODEL=SimpleNamespace(
            IMAGE_SIZE=[64, 64],
            EXTRA=SimpleNamespace(TARGET_TYPE='gaussian', HEATMAP_SIZE=[16, 16], SIGMA=2),
        ),
        kp_dist_and_score_both_satisfy=True,
        kp_pixel_dist_filter=True,
        score_filter=True,
        score_diff_reweight=True,
        kp_pixel_dist_diff_reweight=True,
    )

    B, J, H, W = 2, 24, 16, 16  # num_joints = 24 as in the module
    keys = jax.random.split(jax.random.PRNGKey(0), 24)
    hm = lambda k: jax.random.uniform(k, (B, J, H, W), jnp.float32)

    sup_ht1, sup_ht2, sup_ht3 = hm(keys[0]), hm(keys[1]), hm(keys[2])
    unsup_ht1, unsup_ht2, ensemble_unsup_ht = hm(keys[3]), hm(keys[4]), hm(keys[5])
    unsup_ht_trans1, unsup_ht_trans2 = hm(keys[6]), hm(keys[7])
    unsup_ht_trans_ensemble = hm(keys[8])
    cons_ht1, cons_ht2, cons_ht_ensemble = hm(keys[9]), hm(keys[10]), hm(keys[11])

    kp_dist_mask = jax.random.bernoulli(keys[12], 0.7, (B, J, 1))
    score_mask = jax.random.bernoulli(keys[13], 0.7, (B, J, 1))
    kp_dist_uncertainty_k = jax.random.uniform(keys[14], (B, J, 1), jnp.float32, 0.5, 1.0)
    score_diff_k = jax.random.uniform(keys[15], (B, J, 1), jnp.float32, 0.5, 1.0)

    sup_target = hm(keys[16])
    unsup_target = hm(keys[17])
    sup_tw = jax.random.bernoulli(keys[18], 0.9, (B, J, 1)).astype(jnp.float32)
    unsup_tw = jax.random.bernoulli(keys[19], 0.9, (B, J, 1)).astype(jnp.float32)

    output = (sup_ht1, sup_ht2, sup_ht3, unsup_ht1, unsup_ht2, ensemble_unsup_ht,
              unsup_ht_trans1, unsup_ht_trans2, unsup_ht_trans_ensemble,
              cons_ht1, cons_ht2, cons_ht_ensemble,
              kp_dist_mask, kp_dist_uncertainty_k, score_mask, score_diff_k, {})
    target = [sup_target, unsup_target]
    target_weight = [sup_tw, unsup_tw]
    meta = [{}, {}]

    loss, loss_dic, pseudo_target = pose_triple_loss(output, target, target_weight, meta, cfg)
    loss = jax.block_until_ready(loss)

    # Quiet correctness check against a pure-JAX reference of the PyTorch math.
    uw_ref = unsup_tw * jnp.logical_or(kp_dist_mask, score_mask).astype(jnp.float32)
    uw_ref = uw_ref * score_diff_k * kp_dist_uncertainty_k
    ref_pose = 0.5 * (_joints_mse_ref(sup_ht1, sup_target, sup_tw)
                      + _joints_mse_ref(sup_ht2, sup_target, sup_tw)
                      + _joints_mse_ref(sup_ht3, sup_target, sup_tw))
    ref_cons = (_joints_mse_ref(cons_ht1, unsup_ht_trans2, uw_ref)
                + _joints_mse_ref(cons_ht2, unsup_ht_trans1, uw_ref)
                + _joints_mse_ref(cons_ht_ensemble, unsup_ht_trans_ensemble, uw_ref))
    np.testing.assert_allclose(np.asarray(loss), np.asarray(ref_pose + ref_cons),
                               rtol=1e-4, atol=1e-6)
    np.testing.assert_allclose(np.asarray(loss_dic['loss_pose']), np.asarray(ref_pose),
                               rtol=1e-4, atol=1e-6)
    np.testing.assert_allclose(np.asarray(loss_dic['loss_cons']), np.asarray(ref_cons),
                               rtol=1e-4, atol=1e-6)

    print("KERNEL_OK")
</pallas_src>

<mosaic_0001>
module attributes {stable_mosaic.version = 11 : i64} {
  func.func @_pose_triple_sse_kernel(%arg0: i32, %arg1: i32, %arg2: memref<8x256xf32, #tpu.memory_space<vmem>>, %arg3: memref<8x256xf32, #tpu.memory_space<vmem>>, %arg4: memref<8x256xf32, #tpu.memory_space<vmem>>, %arg5: memref<8x256xf32, #tpu.memory_space<vmem>>, %arg6: memref<8x1xf32, #tpu.memory_space<vmem>>, %arg7: memref<8x256xf32, #tpu.memory_space<vmem>>, %arg8: memref<8x256xf32, #tpu.memory_space<vmem>>, %arg9: memref<8x256xf32, #tpu.memory_space<vmem>>, %arg10: memref<8x256xf32, #tpu.memory_space<vmem>>, %arg11: memref<8x256xf32, #tpu.memory_space<vmem>>, %arg12: memref<8x256xf32, #tpu.memory_space<vmem>>, %arg13: memref<8x1xf32, #tpu.memory_space<vmem>>, %arg14: memref<8x1xf32, #tpu.memory_space<vmem>>, %arg15: memref<1x8x128xf32, #tpu.memory_space<vmem>>, %arg16: memref<1x8x128xf32, #tpu.memory_space<vmem>>, %arg17: memref<8x256xf32, #tpu.memory_space<vmem>>, %arg18: memref<8x256xf32, #tpu.memory_space<vmem>>) attributes {dimension_semantics = [#tpu.dimension_semantics<parallel>, #tpu.dimension_semantics<arbitrary>], iteration_bounds = array<i64: 2, 3>, scalar_prefetch = 0 : i64, scratch_operands = 2 : i64, tpu.core_type = #tpu.core_type<tc>, window_params = [{transform_indices = @transform_0, window_bounds = array<i64: 8, 256>}, {transform_indices = @transform_1, window_bounds = array<i64: 8, 256>}, {transform_indices = @transform_2, window_bounds = array<i64: 8, 256>}, {transform_indices = @transform_3, window_bounds = array<i64: 8, 256>}, {transform_indices = @transform_4, window_bounds = array<i64: 8, 1>}, {transform_indices = @transform_5, window_bounds = array<i64: 8, 256>}, {transform_indices = @transform_6, window_bounds = array<i64: 8, 256>}, {transform_indices = @transform_7, window_bounds = array<i64: 8, 256>}, {transform_indices = @transform_8, window_bounds = array<i64: 8, 256>}, {transform_indices = @transform_9, window_bounds = array<i64: 8, 256>}, {transform_indices = @transform_10, window_bounds = array<i64: 8, 256>}, {transform_indices = @transform_11, window_bounds = array<i64: 8, 1>}, {transform_indices = @transform_12, window_bounds = array<i64: 8, 1>}, {transform_indices = @transform_13, window_bounds = array<i64: 1, 8, 128>}, {transform_indices = @transform_14, window_bounds = array<i64: 1, 8, 128>}]} {
    %c0_i32 = arith.constant 0 : i32
    %0 = arith.cmpi eq, %arg1, %c0_i32 : i32
    %1 = arith.extui %0 : i1 to i32
    %c0_i32_0 = arith.constant 0 : i32
    %2 = arith.cmpi ne, %1, %c0_i32_0 : i32
    scf.if %2 {
      %cst = arith.constant 0.000000e+00 : f32
      %58 = vector.broadcast %cst : f32 to vector<8x256xf32>
      %c0_45 = arith.constant 0 : index
      %c0_46 = arith.constant 0 : index
      %59 = vector.load %arg17[%c0_45, %c0_46] : memref<8x256xf32, #tpu.memory_space<vmem>>, vector<8x256xf32>
      tpu.vector_store %arg17[%c0_45, %c0_46], %58 {strides = array<i32>} : memref<8x256xf32, #tpu.memory_space<vmem>>, vector<8x256xf32>,
      %cst_47 = arith.constant 0.000000e+00 : f32
      %60 = vector.broadcast %cst_47 : f32 to vector<8x256xf32>
      %c0_48 = arith.constant 0 : index
      %c0_49 = arith.constant 0 : index
      %61 = vector.load %arg18[%c0_48, %c0_49] : memref<8x256xf32, #tpu.memory_space<vmem>>, vector<8x256xf32>
      tpu.vector_store %arg18[%c0_48, %c0_49], %60 {strides = array<i32>} : memref<8x256xf32, #tpu.memory_space<vmem>>, vector<8x256xf32>,
    } else {
    }
    %c0 = arith.constant 0 : index
    %c0_1 = arith.constant 0 : index
    %3 = vector.load %arg17[%c0, %c0_1] : memref<8x256xf32, #tpu.memory_space<vmem>>, vector<8x256xf32>
    %c0_2 = arith.constant 0 : index
    %c0_3 = arith.constant 0 : index
    %4 = vector.load %arg2[%c0_2, %c0_3] : memref<8x256xf32, #tpu.memory_space<vmem>>, vector<8x256xf32>
    %c0_4 = arith.constant 0 : index
    %c0_5 = arith.constant 0 : index
    %5 = vector.load %arg5[%c0_4, %c0_5] : memref<8x256xf32, #tpu.memory_space<vmem>>, vector<8x256xf32>
    %6 = arith.subf %4, %5 : vector<8x256xf32>
    %c0_6 = arith.constant 0 : index
    %c0_7 = arith.constant 0 : index
    %7 = vector.load %arg6[%c0_6, %c0_7] : memref<8x1xf32, #tpu.memory_space<vmem>>, vector<8x1xf32>
    %8 = vector.broadcast %7 : vector<8x1xf32> to vector<8x256xf32>
    %9 = arith.mulf %6, %8 : vector<8x256xf32>
    %10 = arith.mulf %9, %9 : vector<8x256xf32>
    %c0_8 = arith.constant 0 : index
    %c0_9 = arith.constant 0 : index
    %11 = vector.load %arg3[%c0_8, %c0_9] : memref<8x256xf32, #tpu.memory_space<vmem>>, vector<8x256xf32>
    %c0_10 = arith.constant 0 : index
    %c0_11 = arith.constant 0 : index
    %12 = vector.load %arg5[%c0_10, %c0_11] : memref<8x256xf32, #tpu.memory_space<vmem>>, vector<8x256xf32>
    %13 = arith.subf %11, %12 : vector<8x256xf32>
    %c0_12 = arith.constant 0 : index
    %c0_13 = arith.constant 0 : index
    %14 = vector.load %arg6[%c0_12, %c0_13] : memref<8x1xf32, #tpu.memory_space<vmem>>, vector<8x1xf32>
    %15 = vector.broadcast %14 : vector<8x1xf32> to vector<8x256xf32>
    %16 = arith.mulf %13, %15 : vector<8x256xf32>
    %17 = arith.mulf %16, %16 : vector<8x256xf32>
    %18 = arith.addf %10, %17 : vector<8x256xf32>
    %c0_14 = arith.constant 0 : index
    %c0_15 = arith.constant 0 : index
    %19 = vector.load %arg4[%c0_14, %c0_15] : memref<8x256xf32, #tpu.memory_space<vmem>>, vector<8x256xf32>
    %c0_16 = arith.constant 0 : index
    %c0_17 = arith.constant 0 : index
    %20 = vector.load %arg5[%c0_16, %c0_17] : memref<8x256xf32, #tpu.memory_space<vmem>>, vector<8x256xf32>
    %21 = arith.subf %19, %20 : vector<8x256xf32>
    %c0_18 = arith.constant 0 : index
    %c0_19 = arith.constant 0 : index
    %22 = vector.load %arg6[%c0_18, %c0_19] : memref<8x1xf32, #tpu.memory_space<vmem>>, vector<8x1xf32>
    %23 = vector.broadcast %22 : vector<8x1xf32> to vector<8x256xf32>
    %24 = arith.mulf %21, %23 : vector<8x256xf32>
    %25 = arith.mulf %24, %24 : vector<8x256xf32>
    %26 = arith.addf %18, %25 : vector<8x256xf32>
    %27 = arith.addf %3, %26 : vector<8x256xf32>
    %c0_20 = arith.constant 0 : index
    %c0_21 = arith.constant 0 : index
    %28 = vector.load %arg17[%c0_20, %c0_21] : memref<8x256xf32, #tpu.memory_space<vmem>>, vector<8x256xf32>
    tpu.vector_store %arg17[%c0_20, %c0_21], %27 {strides = array<i32>} : memref<8x256xf32, #tpu.memory_space<vmem>>, vector<8x256xf32>,
    %c0_22 = arith.constant 0 : index
    %c0_23 = arith.constant 0 : index
    %29 = vector.load %arg18[%c0_22, %c0_23] : memref<8x256xf32, #tpu.memory_space<vmem>>, vector<8x256xf32>
    %c0_24 = arith.constant 0 : index
    %c0_25 = arith.constant 0 : index
    %30 = vector.load %arg7[%c0_24, %c0_25] : memref<8x256xf32, #tpu.memory_space<vmem>>, vector<8x256xf32>
    %c0_26 = arith.constant 0 : index
    %c0_27 = arith.constant 0 : index
    %31 = vector.load %arg10[%c0_26, %c0_27] : memref<8x256xf32, #tpu.memory_space<vmem>>, vector<8x256xf32>
    %32 = arith.subf %30, %31 : vector<8x256xf32>
    %c0_28 = arith.constant 0 : index
    %c0_29 = arith.constant 0 : index
    %33 = vector.load %arg13[%c0_28, %c0_29] : memref<8x1xf32, #tpu.memory_space<vmem>>, vector<8x1xf32>
    %34 = vector.broadcast %33 : vector<8x1xf32> to vector<8x256xf32>
    %35 = arith.mulf %32, %34 : vector<8x256xf32>
    %36 = arith.mulf %35, %35 : vector<8x256xf32>
    %c0_30 = arith.constant 0 : index
    %c0_31 = arith.constant 0 : index
    %37 = vector.load %arg8[%c0_30, %c0_31] : memref<8x256xf32, #tpu.memory_space<vmem>>, vector<8x256xf32>
    %c0_32 = arith.constant 0 : index
    %c0_33 = arith.constant 0 : index
    %38 = vector.load %arg11[%c0_32, %c0_33] : memref<8x256xf32, #tpu.memory_space<vmem>>, vector<8x256xf32>
    %39 = arith.subf %37, %38 : vector<8x256xf32>
    %c0_34 = arith.constant 0 : index
    %c0_35 = arith.constant 0 : index
    %40 = vector.load %arg13[%c0_34, %c0_35] : memref<8x1xf32, #tpu.memory_space<vmem>>, vector<8x1xf32>
    %41 = vector.broadcast %40 : vector<8x1xf32> to vector<8x256xf32>
    %42 = arith.mulf %39, %41 : vector<8x256xf32>
    %43 = arith.mulf %42, %42 : vector<8x256xf32>
    %44 = arith.addf %36, %43 : vector<8x256xf32>
    %c0_36 = arith.constant 0 : index
    %c0_37 = arith.constant 0 : index
    %45 = vector.load %arg9[%c0_36, %c0_37] : memref<8x256xf32, #tpu.memory_space<vmem>>, vector<8x256xf32>
    %c0_38 = arith.constant 0 : index
    %c0_39 = arith.constant 0 : index
    %46 = vector.load %arg12[%c0_38, %c0_39] : memref<8x256xf32, #tpu.memory_space<vmem>>, vector<8x256xf32>
    %47 = arith.subf %45, %46 : vector<8x256xf32>
    %c0_40 = arith.constant 0 : index
    %c0_41 = arith.constant 0 : index
    %48 = vector.load %arg14[%c0_40, %c0_41] : memref<8x1xf32, #tpu.memory_space<vmem>>, vector<8x1xf32>
    %49 = vector.broadcast %48 : vector<8x1xf32> to vector<8x256xf32>
    %50 = arith.mulf %47, %49 : vector<8x256xf32>
    %51 = arith.mulf %50, %50 : vector<8x256xf32>
    %52 = arith.addf %44, %51 : vector<8x256xf32>
    %53 = arith.addf %29, %52 : vector<8x256xf32>
    %c0_42 = arith.constant 0 : index
    %c0_43 = arith.constant 0 : index
    %54 = vector.load %arg18[%c0_42, %c0_43] : memref<8x256xf32, #tpu.memory_space<vmem>>, vector<8x256xf32>
    tpu.vector_store %arg18[%c0_42, %c0_43], %53 {strides = array<i32>} : memref<8x256xf32, #tpu.memory_space<vmem>>, vector<8x256xf32>,
    %c2_i32 = arith.constant 2 : i32
    %55 = arith.cmpi eq, %arg1, %c2_i32 : i32
    %56 = arith.extui %55 : i1 to i32
    %c0_i32_44 = arith.constant 0 : i32
    %57 = arith.cmpi ne, %56, %c0_i32_44 : i32
    scf.if %57 {
      %c0_45 = arith.constant 0 : index
      %c0_46 = arith.constant 0 : index
      %58 = vector.load %arg17[%c0_45, %c0_46] : memref<8x256xf32, #tpu.memory_space<vmem>>, vector<8x256xf32>
      %59 = vector.shape_cast %58 : vector<8x256xf32> to vector<1x8x256xf32>
      %cst = arith.constant dense<0.000000e+00> : vector<1xf32>
      %60 = vector.multi_reduction <add>, %59, %cst [1, 2] : vector<1x8x256xf32> to vector<1xf32>
      %61 = vector.shape_cast %60 : vector<1xf32> to vector<1x1x1xf32>
      %62 = vector.extract %61[0, 0, 0] : f32 from vector<1x1x1xf32>
      %63 = vector.broadcast %62 : f32 to vector<1x8x128xf32>
      %c0_47 = arith.constant 0 : index
      %c0_48 = arith.constant 0 : index
      %c0_49 = arith.constant 0 : index
      %64 = vector.load %arg15[%c0_47, %c0_48, %c0_49] : memref<1x8x128xf32, #tpu.memory_space<vmem>>, vector<1x8x128xf32>
      tpu.vector_store %arg15[%c0_47, %c0_48, %c0_49], %63 {strides = array<i32>} : memref<1x8x128xf32, #tpu.memory_space<vmem>>, vector<1x8x128xf32>,
      %c0_50 = arith.constant 0 : index
      %c0_51 = arith.constant 0 : index
      %65 = vector.load %arg18[%c0_50, %c0_51] : memref<8x256xf32, #tpu.memory_space<vmem>>, vector<8x256xf32>
      %66 = vector.shape_cast %65 : vector<8x256xf32> to vector<1x8x256xf32>
      %cst_52 = arith.constant dense<0.000000e+00> : vector<1xf32>
      %67 = vector.multi_reduction <add>, %66, %cst_52 [1, 2] : vector<1x8x256xf32> to vector<1xf32>
      %68 = vector.shape_cast %67 : vector<1xf32> to vector<1x1x1xf32>
      %69 = vector.extract %68[0, 0, 0] : f32 from vector<1x1x1xf32>
      %70 = vector.broadcast %69 : f32 to vector<1x8x128xf32>
      %c0_53 = arith.constant 0 : index
      %c0_54 = arith.constant 0 : index
      %c0_55 = arith.constant 0 : index
      %71 = vector.load %arg16[%c0_53, %c0_54, %c0_55] : memref<1x8x128xf32, #tpu.memory_space<vmem>>, vector<1x8x128xf32>
      tpu.vector_store %arg16[%c0_53, %c0_54, %c0_55], %70 {strides = array<i32>} : memref<1x8x128xf32, #tpu.memory_space<vmem>>, vector<1x8x128xf32>,
    } else {
    }
    return
  }
  func.func @transform_0(%arg0: i32, %arg1: i32) -> (i32, i32) {
    %c3_i32 = arith.constant 3 : i32
    %0 = arith.muli %arg0, %c3_i32 : i32
    %1 = arith.addi %0, %arg1 : i32
    %c0_i32 = arith.constant 0 : i32
    %c0_i32_0 = arith.constant 0 : i32
    return %1, %c0_i32 : i32, i32
  }
  func.func @transform_1(%arg0: i32, %arg1: i32) -> (i32, i32) {
    %c3_i32 = arith.constant 3 : i32
    %0 = arith.muli %arg0, %c3_i32 : i32
    %1 = arith.addi %0, %arg1 : i32
    %c0_i32 = arith.constant 0 : i32
    %c0_i32_0 = arith.constant 0 : i32
    return %1, %c0_i32 : i32, i32
  }
  func.func @transform_2(%arg0: i32, %arg1: i32) -> (i32, i32) {
    %c3_i32 = arith.constant 3 : i32
    %0 = arith.muli %arg0, %c3_i32 : i32
    %1 = arith.addi %0, %arg1 : i32
    %c0_i32 = arith.constant 0 : i32
    %c0_i32_0 = arith.constant 0 : i32
    return %1, %c0_i32 : i32, i32
  }
  func.func @transform_3(%arg0: i32, %arg1: i32) -> (i32, i32) {
    %c3_i32 = arith.constant 3 : i32
    %0 = arith.muli %arg0, %c3_i32 : i32
    %1 = arith.addi %0, %arg1 : i32
    %c0_i32 = arith.constant 0 : i32
    %c0_i32_0 = arith.constant 0 : i32
    return %1, %c0_i32 : i32, i32
  }
  func.func @transform_4(%arg0: i32, %arg1: i32) -> (i32, i32) {
    %c3_i32 = arith.constant 3 : i32
    %0 = arith.muli %arg0, %c3_i32 : i32
    %1 = arith.addi %0, %arg1 : i32
    %c0_i32 = arith.constant 0 : i32
    %c0_i32_0 = arith.constant 0 : i32
    return %1, %c0_i32 : i32, i32
  }
  func.func @transform_5(%arg0: i32, %arg1: i32) -> (i32, i32) {
    %c3_i32 = arith.constant 3 : i32
    %0 = arith.muli %arg0, %c3_i32 : i32
    %1 = arith.addi %0, %arg1 : i32
    %c0_i32 = arith.constant 0 : i32
    %c0_i32_0 = arith.constant 0 : i32
    return %1, %c0_i32 : i32, i32
  }
  func.func @transform_6(%arg0: i32, %arg1: i32) -> (i32, i32) {
    %c3_i32 = arith.constant 3 : i32
    %0 = arith.muli %arg0, %c3_i32 : i32
    %1 = arith.addi %0, %arg1 : i32
    %c0_i32 = arith.constant 0 : i32
    %c0_i32_0 = arith.constant 0 : i32
    return %1, %c0_i32 : i32, i32
  }
  func.func @transform_7(%arg0: i32, %arg1: i32) -> (i32, i32) {
    %c3_i32 = arith.constant 3 : i32
    %0 = arith.muli %arg0, %c3_i32 : i32
    %1 = arith.addi %0, %arg1 : i32
    %c0_i32 = arith.constant 0 : i32
    %c0_i32_0 = arith.constant 0 : i32
    return %1, %c0_i32 : i32, i32
  }
  func.func @transform_8(%arg0: i32, %arg1: i32) -> (i32, i32) {
    %c3_i32 = arith.constant 3 : i32
    %0 = arith.muli %arg0, %c3_i32 : i32
    %1 = arith.addi %0, %arg1 : i32
    %c0_i32 = arith.constant 0 : i32
    %c0_i32_0 = arith.constant 0 : i32
    return %1, %c0_i32 : i32, i32
  }
  func.func @transform_9(%arg0: i32, %arg1: i32) -> (i32, i32) {
    %c3_i32 = arith.constant 3 : i32
    %0 = arith.muli %arg0, %c3_i32 : i32
    %1 = arith.addi %0, %arg1 : i32
    %c0_i32 = arith.constant 0 : i32
    %c0_i32_0 = arith.constant 0 : i32
    return %1, %c0_i32 : i32, i32
  }
  func.func @transform_10(%arg0: i32, %arg1: i32) -> (i32, i32) {
    %c3_i32 = arith.constant 3 : i32
    %0 = arith.muli %arg0, %c3_i32 : i32
    %1 = arith.addi %0, %arg1 : i32
    %c0_i32 = arith.constant 0 : i32
    %c0_i32_0 = arith.constant 0 : i32
    return %1, %c0_i32 : i32, i32
  }
  func.func @transform_11(%arg0: i32, %arg1: i32) -> (i32, i32) {
    %c3_i32 = arith.constant 3 : i32
    %0 = arith.muli %arg0, %c3_i32 : i32
    %1 = arith.addi %0, %arg1 : i32
    %c0_i32 = arith.constant 0 : i32
    %c0_i32_0 = arith.constant 0 : i32
    return %1, %c0_i32 : i32, i32
  }
  func.func @transform_12(%arg0: i32, %arg1: i32) -> (i32, i32) {
    %c3_i32 = arith.constant 3 : i32
    %0 = arith.muli %arg0, %c3_i32 : i32
    %1 = arith.addi %0, %arg1 : i32
    %c0_i32 = arith.constant 0 : i32
    %c0_i32_0 = arith.constant 0 : i32
    return %1, %c0_i32 : i32, i32
  }
  func.func @transform_13(%arg0: i32, %arg1: i32) -> (i32, i32, i32) {
    %c0_i32 = arith.constant 0 : i32
    %c0_i32_0 = arith.constant 0 : i32
    %c0_i32_1 = arith.constant 0 : i32
    return %arg0, %c0_i32, %c0_i32_0 : i32, i32, i32
  }
  func.func @transform_14(%arg0: i32, %arg1: i32) -> (i32, i32, i32) {
    %c0_i32 = arith.constant 0 : i32
    %c0_i32_0 = arith.constant 0 : i32
    %c0_i32_1 = arith.constant 0 : i32
    return %arg0, %c0_i32, %c0_i32_0 : i32, i32, i32
  }
}

</mosaic_0001>

<llo_original>
// kernel: tpu_custom_call.1
$region0: #{tpu_custom_call.1}
  #allocation0 [shape = 'u32[]', space=smem, size = 0x4, offset = 0x4, fixed_abs, tag = 'smem constant byte address 0x4 - core index']
  #allocation1 [shape = 'u32[72,128]{1,0:T(1,128)}', space=vmem, size = 0x9000, scoped, tag = 'internal scratch']
  #allocation2 [shape = 'f32[8,256]{1,0:T(8,128)}', space=vmem, size = 0x2000, scoped, tag = 'scratch operand']
  #allocation3 [shape = 'f32[8,256]{1,0:T(8,128)}', space=vmem, size = 0x2000, scoped, tag = 'scratch operand']
  %s0 = inlined_call_operand.vmem [shape: f32[48,256], index: 0, kind: input, shape index: {}]
  %s1 = inlined_call_operand.hbm [shape: f32[48,256], index: 1, kind: input, shape index: {}]
  %s2 = inlined_call_operand.hbm [shape: f32[48,256], index: 2, kind: input, shape index: {}]
  %s3 = inlined_call_operand.hbm [shape: f32[48,256], index: 3, kind: input, shape index: {}]
  %s4 = inlined_call_operand.vmem [shape: f32[48,1], index: 4, kind: input, shape index: {}]
  %s5 = inlined_call_operand.hbm [shape: f32[48,256], index: 5, kind: input, shape index: {}]
  %s6 = inlined_call_operand.hbm [shape: f32[48,256], index: 6, kind: input, shape index: {}]
  %s7 = inlined_call_operand.hbm [shape: f32[48,256], index: 7, kind: input, shape index: {}]
  %s8 = inlined_call_operand.hbm [shape: f32[48,256], index: 8, kind: input, shape index: {}]
  %s9 = inlined_call_operand.hbm [shape: f32[48,256], index: 9, kind: input, shape index: {}]
  %s10 = inlined_call_operand.hbm [shape: f32[48,256], index: 10, kind: input, shape index: {}]
  %s11 = inlined_call_operand.vmem [shape: f32[48,1], index: 11, kind: input, shape index: {}]
  %s12 = inlined_call_operand.vmem [shape: f32[48,1], index: 12, kind: input, shape index: {}]
  %s13 = inlined_call_operand.hbm [shape: f32[2,8,128], index: 13, kind: output, shape index: {0}]
  %s14 = inlined_call_operand.hbm [shape: f32[2,8,128], index: 14, kind: output, shape index: {1}]
  %15 = xla_tuple %s13, %s14
  %s16 = sld [smem:[#allocation0]]
  $region137: #{tpu_custom_call.1} parent=0
    _
  %s18 = ssub.s32 1, %s16
  %s19 = scalar_select 0, %s18, %s16
  $region1: #{tpu_custom_call.1} parent=0
    #allocation4 [shape = 'u8[16384]{0}', space=vmem, size = 0x4000, scoped, tag = 'input window, operand 1']
    #allocation5 [shape = 's32[2]{0}', space=sflag, size = 0x8, scoped, tag = 'scoped memory for tpu_custom_call.1']
    #allocation6 [shape = 's32[2]{0}', space=sflag, size = 0x8, scoped, tag = 'scoped memory for tpu_custom_call.1']
    #allocation7 [shape = 'u8[16384]{0}', space=vmem, size = 0x4000, scoped, tag = 'input window, operand 2']
    #allocation8 [shape = 's32[2]{0}', space=sflag, size = 0x8, scoped, tag = 'scoped memory for tpu_custom_call.1']
    #allocation9 [shape = 'u8[16384]{0}', space=vmem, size = 0x4000, scoped, tag = 'input window, operand 3']
    #allocation10 [shape = 'u8[16384]{0}', space=vmem, size = 0x4000, scoped, tag = 'input window, operand 5']
    #allocation11 [shape = 's32[2]{0}', space=sflag, size = 0x8, scoped, tag = 'scoped memory for tpu_custom_call.1']
    #allocation12 [shape = 'u8[16384]{0}', space=vmem, size = 0x4000, scoped, tag = 'input window, operand 6']
    #allocation13 [shape = 'u8[16384]{0}', space=vmem, size = 0x4000, scoped, tag = 'input window, operand 7']
    #allocation14 [shape = 's32[2]{0}', space=sflag, size = 0x8, scoped, tag = 'scoped memory for tpu_custom_call.1']
    #allocation15 [shape = 'u8[16384]{0}', space=vmem, size = 0x4000, scoped, tag = 'input window, operand 8']
    #allocation16 [shape = 'u8[16384]{0}', space=vmem, size = 0x4000, scoped, tag = 'input window, operand 9']
    #allocation17 [shape = 's32[2]{0}', space=sflag, size = 0x8, scoped, tag = 'scoped memory for tpu_custom_call.1']
    #allocation18 [shape = 'u8[16384]{0}', space=vmem, size = 0x4000, scoped, tag = 'input window, operand 10']
    #allocation19 [shape = 'u8[8192]{0}', space=vmem, size = 0x2000, scoped, tag = 'output window, operand 0']
    #allocation20 [shape = 'u8[8192]{0}', space=vmem, size = 0x2000, scoped, tag = 'output window, operand 1']
    #allocation21 [shape = 's32[2]{0}', space=sflag, size = 0x8, scoped, tag = 'scoped memory for tpu_custom_call.1']
    %20 = vsyncpa [#allocation5], 0
    %s21 = scalar_lea.sflag [#allocation5], 1
    %22 = vsyncpa %s21, 0
    %23 = vsyncpa [#allocation8], 0
    %s24 = scalar_lea.sflag [#allocation8], 1
    %25 = vsyncpa %s24, 0
    %26 = vsyncpa [#allocation11], 0
    %s27 = scalar_lea.sflag [#allocation11], 1
    %28 = vsyncpa %s27, 0
    %29 = vsyncpa [#allocation14], 0
    %s30 = scalar_lea.sflag [#allocation14], 1
    %31 = vsyncpa %s30, 0
    %32 = vsyncpa [#allocation17], 0
    %s33 = scalar_lea.sflag [#allocation17], 1
    %34 = vsyncpa %s33, 0
    %35 = vsyncpa [#allocation6], 0
    %s36 = scalar_lea.sflag [#allocation6], 1
    %37 = vsyncpa %s36, 0
    %38 = vsyncpa [#allocation21], 0
    %s39 = scalar_lea.sflag [#allocation21], 1
    %40 = vsyncpa %s39, 0
    loop: start=0, step=1, limit=8
    $region2: #{tpu_custom_call.1} parent=1 // loop_pre_header
      _
    $region3: #{tpu_custom_call.1} parent=1 // loop_header
      %s42 = sphi 0, %s46
      %p43 = scmp.ge.s32.totalorder %s42, 8
      %s49 = sphi 0, %s61
      %s50 = sphi 0, %s57
      %s51 = sphi 0, %s49
      %s52 = sphi 0, %s50
      %s53 = sphi 0, %s51
      %s54 = sphi 0, %s52
      %s68 = sphi 0, %s70
      %s71 = sphi 0, %s68
      %s72 = sphi 0, %s71
      %s88 = sphi 0, %s72
      %s98 = sphi 0, %s100
      %s101 = sphi 0, %s98
      %s102 = sphi 0, %s101
      %s118 = sphi 0, %s102
      %s128 = sphi 0, %s130
      %s131 = sphi 0, %s128
      %s132 = sphi 0, %s131
      %s148 = sphi 0, %s132
      %s158 = sphi 0, %s160
      %s161 = sphi 0, %s158
      %s162 = sphi 0, %s161
      %s178 = sphi 0, %s162
      %s188 = sphi 0, %s190
      %s191 = sphi 0, %s188
      %s192 = sphi 0, %s191
      %s208 = sphi 0, %s192
      %s218 = sphi 0, %s220
      %s221 = sphi 0, %s218
      %s222 = sphi 0, %s221
      %s238 = sphi 0, %s222
      %s248 = sphi 0, %s250
      %s251 = sphi 0, %s248
      %s252 = sphi 0, %s251
      %s268 = sphi 0, %s252
      %s278 = sphi 0, %s280
      %s281 = sphi 0, %s278
      %s282 = sphi 0, %s281
      %s298 = sphi 0, %s282
      %s308 = sphi 0, %s310
      %s311 = sphi 0, %s308
      %s312 = sphi 0, %s311
      %s328 = sphi 0, %s312
      %s338 = sphi 0, %s340
      %s341 = sphi 0, %s338
      %s342 = sphi 0, %s341
      %s358 = sphi 0, %s342
      %s368 = sphi 0, %s370
      %s371 = sphi 0, %s368
      %s372 = sphi 0, %s371
      %s388 = sphi 0, %s372
      %s398 = sphi 0, %s400
      %s401 = sphi 0, %s398
      %s402 = sphi 0, %s401
      %s418 = sphi 0, %s402
      %s428 = sphi 0, %s430
      %s431 = sphi 0, %s428
      %s432 = sphi 0, %s431
      %s448 = sphi 0, %s432
      %s454 = sphi 0, %s456
      %s457 = sphi 0, %s454
      %s458 = sphi 0, %s457
      %s474 = sphi 0, %s458
      %s480 = sphi 0, %s482
      %s483 = sphi 0, %s480
      %s484 = sphi 0, %s483
      %s500 = sphi 0, %s484
    $region4: #{tpu_custom_call.1} parent=1 // loop_header_branch
      %45 = sbr.rel (%p43) target = $region8
    $region5: #{tpu_custom_call.1} parent=1 // loop_body
      %s47 = ssub.s32 %s42, 1
      %s48 = ssub.s32 %s42, 2
      %s55 = sadd.s32 1, %s50
      %p56 = scmp.ge.s32.totalorder %s55, 3
      %s57 = scalar_select %p56, 0, %s55
      %s58 = sadd.s32 1, %s49
      %s59 = scalar_select %p56, %s58, %s49
      %p60 = scmp.ge.s32.totalorder %s59, 2
      %s61 = scalar_select %p60, 0, %s59
      %s62 = smul.u32 %s49, 3
      %s63 = sadd.s32 %s62, %s50
      %s64 = smul.u32 %s61, 3
      %s65 = sadd.s32 %s64, %s57
      %s66 = ssub.s32 %s63, %s65
      %p67 = scmp.eq.s32.totalorder %s66, 0
      %s69 = sadd.s32 %s68, 1
      %s70 = scalar_select %p67, %s68, %s69
      %p73 = pneg %p67
      %p74 = scmp.eq.s32.totalorder %s42, 5
      %p75 = por %p73, %p74
      %p76 = scmp.ne.s32.totalorder %s68, %s71
      %p77 = scmp.eq.s32.totalorder %s42, 0
      %p78 = por %p76, %p77
      %p79 = scmp.ne.s32.totalorder %s68, %s71
      %p80 = scmp.eq.s32.totalorder %s47, 5
      %p81 = por %p79, %p80
      %p82 = scmp.ne.s32.totalorder %s71, %s72
      %p83 = scmp.eq.s32.totalorder %s47, 0
      %p84 = por %p82, %p83
      %p85 = scmp.ne.s32.totalorder %s71, %s72
      %p86 = scmp.eq.s32.totalorder %s48, 5
      %p87 = por %p85, %p86
      %p89 = scmp.ne.s32.totalorder %s72, %s88
      %p90 = scmp.eq.s32.totalorder %s48, 0
      %p91 = por %p89, %p90
      %s92 = smul.u32 %s49, 3
      %s93 = sadd.s32 %s92, %s50
      %s94 = smul.u32 %s61, 3
      %s95 = sadd.s32 %s94, %s57
      %s96 = ssub.s32 %s93, %s95
      %p97 = scmp.eq.s32.totalorder %s96, 0
      %s99 = sadd.s32 %s98, 1
      %s100 = scalar_select %p97, %s98, %s99
      %p103 = pneg %p97
      %p104 = scmp.eq.s32.totalorder %s42, 5
      %p105 = por %p103, %p104
      %p106 = scmp.ne.s32.totalorder %s98, %s101
      %p107 = scmp.eq.s32.totalorder %s42, 0
      %p108 = por %p106, %p107
      %p109 = scmp.ne.s32.totalorder %s98, %s101
      %p110 = scmp.eq.s32.totalorder %s47, 5
      %p111 = por %p109, %p110
      %p112 = scmp.ne.s32.totalorder %s101, %s102
      %p113 = scmp.eq.s32.totalorder %s47, 0
      %p114 = por %p112, %p113
      %p115 = scmp.ne.s32.totalorder %s101, %s102
      %p116 = scmp.eq.s32.totalorder %s48, 5
      %p117 = por %p115, %p116
      %p119 = scmp.ne.s32.totalorder %s102, %s118
      %p120 = scmp.eq.s32.totalorder %s48, 0
      %p121 = por %p119, %p120
      %s122 = smul.u32 %s49, 3
      %s123 = sadd.s32 %s122, %s50
      %s124 = smul.u32 %s61, 3
      %s125 = sadd.s32 %s124, %s57
      %s126 = ssub.s32 %s123, %s125
      %p127 = scmp.eq.s32.totalorder %s126, 0
      %s129 = sadd.s32 %s128, 1
      %s130 = scalar_select %p127, %s128, %s129
      %p133 = pneg %p127
      %p134 = scmp.eq.s32.totalorder %s42, 5
      %p135 = por %p133, %p134
      %p136 = scmp.ne.s32.totalorder %s128, %s131
      %p137 = scmp.eq.s32.totalorder %s42, 0
      %p138 = por %p136, %p137
      %p139 = scmp.ne.s32.totalorder %s128, %s131
      %p140 = scmp.eq.s32.totalorder %s47, 5
      %p141 = por %p139, %p140
      %p142 = scmp.ne.s32.totalorder %s131, %s132
      %p143 = scmp.eq.s32.totalorder %s47, 0
      %p144 = por %p142, %p143
      %p145 = scmp.ne.s32.totalorder %s131, %s132
      %p146 = scmp.eq.s32.totalorder %s48, 5
      %p147 = por %p145, %p146
      %p149 = scmp.ne.s32.totalorder %s132, %s148
      %p150 = scmp.eq.s32.totalorder %s48, 0
      %p151 = por %p149, %p150
      %s152 = smul.u32 %s49, 3
      %s153 = sadd.s32 %s152, %s50
      %s154 = smul.u32 %s61, 3
      %s155 = sadd.s32 %s154, %s57
      %s156 = ssub.s32 %s153, %s155
      %p157 = scmp.eq.s32.totalorder %s156, 0
      %s159 = sadd.s32 %s158, 1
      %s160 = scalar_select %p157, %s158, %s159
      %p163 = pneg %p157
      %p164 = scmp.eq.s32.totalorder %s42, 5
      %p165 = por %p163, %p164
      %p166 = scmp.ne.s32.totalorder %s158, %s161
      %p167 = scmp.eq.s32.totalorder %s42, 0
      %p168 = por %p166, %p167
      %p169 = scmp.ne.s32.totalorder %s158, %s161
      %p170 = scmp.eq.s32.totalorder %s47, 5
      %p171 = por %p169, %p170
      %p172 = scmp.ne.s32.totalorder %s161, %s162
      %p173 = scmp.eq.s32.totalorder %s47, 0
      %p174 = por %p172, %p173
      %p175 = scmp.ne.s32.totalorder %s161, %s162
      %p176 = scmp.eq.s32.totalorder %s48, 5
      %p177 = por %p175, %p176
      %p179 = scmp.ne.s32.totalorder %s162, %s178
      %p180 = scmp.eq.s32.totalorder %s48, 0
      %p181 = por %p179, %p180
      %s182 = smul.u32 %s49, 3
      %s183 = sadd.s32 %s182, %s50
      %s184 = smul.u32 %s61, 3
      %s185 = sadd.s32 %s184, %s57
      %s186 = ssub.s32 %s183, %s185
      %p187 = scmp.eq.s32.totalorder %s186, 0
      %s189 = sadd.s32 %s188, 1
      %s190 = scalar_select %p187, %s188, %s189
      %p193 = pneg %p187
      %p194 = scmp.eq.s32.totalorder %s42, 5
      %p195 = por %p193, %p194
      %p196 = scmp.ne.s32.totalorder %s188, %s191
      %p197 = scmp.eq.s32.totalorder %s42, 0
      %p198 = por %p196, %p197
      %p199 = scmp.ne.s32.totalorder %s188, %s191
      %p200 = scmp.eq.s32.totalorder %s47, 5
      %p201 = por %p199, %p200
      %p202 = scmp.ne.s32.totalorder %s191, %s192
      %p203 = scmp.eq.s32.totalorder %s47, 0
      %p204 = por %p202, %p203
      %p205 = scmp.ne.s32.totalorder %s191, %s192
      %p206 = scmp.eq.s32.totalorder %s48, 5
      %p207 = por %p205, %p206
      %p209 = scmp.ne.s32.totalorder %s192, %s208
      %p210 = scmp.eq.s32.totalorder %s48, 0
      %p211 = por %p209, %p210
      %s212 = smul.u32 %s49, 3
      %s213 = sadd.s32 %s212, %s50
      %s214 = smul.u32 %s61, 3
      %s215 = sadd.s32 %s214, %s57
      %s216 = ssub.s32 %s213, %s215
      %p217 = scmp.eq.s32.totalorder %s216, 0
      %s219 = sadd.s32 %s218, 1
      %s220 = scalar_select %p217, %s218, %s219
      %p223 = pneg %p217
      %p224 = scmp.eq.s32.totalorder %s42, 5
      %p225 = por %p223, %p224
      %p226 = scmp.ne.s32.totalorder %s218, %s221
      %p227 = scmp.eq.s32.totalorder %s42, 0
      %p228 = por %p226, %p227
      %p229 = scmp.ne.s32.totalorder %s218, %s221
      %p230 = scmp.eq.s32.totalorder %s47, 5
      %p231 = por %p229, %p230
      %p232 = scmp.ne.s32.totalorder %s221, %s222
      %p233 = scmp.eq.s32.totalorder %s47, 0
      %p234 = por %p232, %p233
      %p235 = scmp.ne.s32.totalorder %s221, %s222
      %p236 = scmp.eq.s32.totalorder %s48, 5
      %p237 = por %p235, %p236
      %p239 = scmp.ne.s32.totalorder %s222, %s238
      %p240 = scmp.eq.s32.totalorder %s48, 0
      %p241 = por %p239, %p240
      %s242 = smul.u32 %s49, 3
      %s243 = sadd.s32 %s242, %s50
      %s244 = smul.u32 %s61, 3
      %s245 = sadd.s32 %s244, %s57
      %s246 = ssub.s32 %s243, %s245
      %p247 = scmp.eq.s32.totalorder %s246, 0
      %s249 = sadd.s32 %s248, 1
      %s250 = scalar_select %p247, %s248, %s249
      %p253 = pneg %p247
      %p254 = scmp.eq.s32.totalorder %s42, 5
      %p255 = por %p253, %p254
      %p256 = scmp.ne.s32.totalorder %s248, %s251
      %p257 = scmp.eq.s32.totalorder %s42, 0
      %p258 = por %p256, %p257
      %p259 = scmp.ne.s32.totalorder %s248, %s251
      %p260 = scmp.eq.s32.totalorder %s47, 5
      %p261 = por %p259, %p260
      %p262 = scmp.ne.s32.totalorder %s251, %s252
      %p263 = scmp.eq.s32.totalorder %s47, 0
      %p264 = por %p262, %p263
      %p265 = scmp.ne.s32.totalorder %s251, %s252
      %p266 = scmp.eq.s32.totalorder %s48, 5
      %p267 = por %p265, %p266
      %p269 = scmp.ne.s32.totalorder %s252, %s268
      %p270 = scmp.eq.s32.totalorder %s48, 0
      %p271 = por %p269, %p270
      %s272 = smul.u32 %s49, 3
      %s273 = sadd.s32 %s272, %s50
      %s274 = smul.u32 %s61, 3
      %s275 = sadd.s32 %s274, %s57
      %s276 = ssub.s32 %s273, %s275
      %p277 = scmp.eq.s32.totalorder %s276, 0
      %s279 = sadd.s32 %s278, 1
      %s280 = scalar_select %p277, %s278, %s279
      %p283 = pneg %p277
      %p284 = scmp.eq.s32.totalorder %s42, 5
      %p285 = por %p283, %p284
      %p286 = scmp.ne.s32.totalorder %s278, %s281
      %p287 = scmp.eq.s32.totalorder %s42, 0
      %p288 = por %p286, %p287
      %p289 = scmp.ne.s32.totalorder %s278, %s281
      %p290 = scmp.eq.s32.totalorder %s47, 5
      %p291 = por %p289, %p290
      %p292 = scmp.ne.s32.totalorder %s281, %s282
      %p293 = scmp.eq.s32.totalorder %s47, 0
      %p294 = por %p292, %p293
      %p295 = scmp.ne.s32.totalorder %s281, %s282
      %p296 = scmp.eq.s32.totalorder %s48, 5
      %p297 = por %p295, %p296
      %p299 = scmp.ne.s32.totalorder %s282, %s298
      %p300 = scmp.eq.s32.totalorder %s48, 0
      %p301 = por %p299, %p300
      %s302 = smul.u32 %s49, 3
      %s303 = sadd.s32 %s302, %s50
      %s304 = smul.u32 %s61, 3
      %s305 = sadd.s32 %s304, %s57
      %s306 = ssub.s32 %s303, %s305
      %p307 = scmp.eq.s32.totalorder %s306, 0
      %s309 = sadd.s32 %s308, 1
      %s310 = scalar_select %p307, %s308, %s309
      %p313 = pneg %p307
      %p314 = scmp.eq.s32.totalorder %s42, 5
      %p315 = por %p313, %p314
      %p316 = scmp.ne.s32.totalorder %s308, %s311
      %p317 = scmp.eq.s32.totalorder %s42, 0
      %p318 = por %p316, %p317
      %p319 = scmp.ne.s32.totalorder %s308, %s311
      %p320 = scmp.eq.s32.totalorder %s47, 5
      %p321 = por %p319, %p320
      %p322 = scmp.ne.s32.totalorder %s311, %s312
      %p323 = scmp.eq.s32.totalorder %s47, 0
      %p324 = por %p322, %p323
      %p325 = scmp.ne.s32.totalorder %s311, %s312
      %p326 = scmp.eq.s32.totalorder %s48, 5
      %p327 = por %p325, %p326
      %p329 = scmp.ne.s32.totalorder %s312, %s328
      %p330 = scmp.eq.s32.totalorder %s48, 0
      %p331 = por %p329, %p330
      %s332 = smul.u32 %s49, 3
      %s333 = sadd.s32 %s332, %s50
      %s334 = smul.u32 %s61, 3
      %s335 = sadd.s32 %s334, %s57
      %s336 = ssub.s32 %s333, %s335
      %p337 = scmp.eq.s32.totalorder %s336, 0
      %s339 = sadd.s32 %s338, 1
      %s340 = scalar_select %p337, %s338, %s339
      %p343 = pneg %p337
      %p344 = scmp.eq.s32.totalorder %s42, 5
      %p345 = por %p343, %p344
      %p346 = scmp.ne.s32.totalorder %s338, %s341
      %p347 = scmp.eq.s32.totalorder %s42, 0
      %p348 = por %p346, %p347
      %p349 = scmp.ne.s32.totalorder %s338, %s341
      %p350 = scmp.eq.s32.totalorder %s47, 5
      %p351 = por %p349, %p350
      %p352 = scmp.ne.s32.totalorder %s341, %s342
      %p353 = scmp.eq.s32.totalorder %s47, 0
      %p354 = por %p352, %p353
      %p355 = scmp.ne.s32.totalorder %s341, %s342
      %p356 = scmp.eq.s32.totalorder %s48, 5
      %p357 = por %p355, %p356
      %p359 = scmp.ne.s32.totalorder %s342, %s358
      %p360 = scmp.eq.s32.totalorder %s48, 0
      %p361 = por %p359, %p360
      %s362 = smul.u32 %s49, 3
      %s363 = sadd.s32 %s362, %s50
      %s364 = smul.u32 %s61, 3
      %s365 = sadd.s32 %s364, %s57
      %s366 = ssub.s32 %s363, %s365
      %p367 = scmp.eq.s32.totalorder %s366, 0
      %s369 = sadd.s32 %s368, 1
      %s370 = scalar_select %p367, %s368, %s369
      %p373 = pneg %p367
      %p374 = scmp.eq.s32.totalorder %s42, 5
      %p375 = por %p373, %p374
      %p376 = scmp.ne.s32.totalorder %s368, %s371
      %p377 = scmp.eq.s32.totalorder %s42, 0
      %p378 = por %p376, %p377
      %p379 = scmp.ne.s32.totalorder %s368, %s371
      %p380 = scmp.eq.s32.totalorder %s47, 5
      %p381 = por %p379, %p380
      %p382 = scmp.ne.s32.totalorder %s371, %s372
      %p383 = scmp.eq.s32.totalorder %s47, 0
      %p384 = por %p382, %p383
      %p385 = scmp.ne.s32.totalorder %s371, %s372
      %p386 = scmp.eq.s32.totalorder %s48, 5
      %p387 = por %p385, %p386
      %p389 = scmp.ne.s32.totalorder %s372, %s388
      %p390 = scmp.eq.s32.totalorder %s48, 0
      %p391 = por %p389, %p390
      %s392 = smul.u32 %s49, 3
      %s393 = sadd.s32 %s392, %s50
      %s394 = smul.u32 %s61, 3
      %s395 = sadd.s32 %s394, %s57
      %s396 = ssub.s32 %s393, %s395
      %p397 = scmp.eq.s32.totalorder %s396, 0
      %s399 = sadd.s32 %s398, 1
      %s400 = scalar_select %p397, %s398, %s399
      %p403 = pneg %p397
      %p404 = scmp.eq.s32.totalorder %s42, 5
      %p405 = por %p403, %p404
      %p406 = scmp.ne.s32.totalorder %s398, %s401
      %p407 = scmp.eq.s32.totalorder %s42, 0
      %p408 = por %p406, %p407
      %p409 = scmp.ne.s32.totalorder %s398, %s401
      %p410 = scmp.eq.s32.totalorder %s47, 5
      %p411 = por %p409, %p410
      %p412 = scmp.ne.s32.totalorder %s401, %s402
      %p413 = scmp.eq.s32.totalorder %s47, 0
      %p414 = por %p412, %p413
      %p415 = scmp.ne.s32.totalorder %s401, %s402
      %p416 = scmp.eq.s32.totalorder %s48, 5
      %p417 = por %p415, %p416
      %p419 = scmp.ne.s32.totalorder %s402, %s418
      %p420 = scmp.eq.s32.totalorder %s48, 0
      %p421 = por %p419, %p420
      %s422 = smul.u32 %s49, 3
      %s423 = sadd.s32 %s422, %s50
      %s424 = smul.u32 %s61, 3
      %s425 = sadd.s32 %s424, %s57
      %s426 = ssub.s32 %s423, %s425
      %p427 = scmp.eq.s32.totalorder %s426, 0
      %s429 = sadd.s32 %s428, 1
      %s430 = scalar_select %p427, %s428, %s429
      %p433 = pneg %p427
      %p434 = scmp.eq.s32.totalorder %s42, 5
      %p435 = por %p433, %p434
      %p436 = scmp.ne.s32.totalorder %s428, %s431
      %p437 = scmp.eq.s32.totalorder %s42, 0
      %p438 = por %p436, %p437
      %p439 = scmp.ne.s32.totalorder %s428, %s431
      %p440 = scmp.eq.s32.totalorder %s47, 5
      %p441 = por %p439, %p440
      %p442 = scmp.ne.s32.totalorder %s431, %s432
      %p443 = scmp.eq.s32.totalorder %s47, 0
      %p444 = por %p442, %p443
      %p445 = scmp.ne.s32.totalorder %s431, %s432
      %p446 = scmp.eq.s32.totalorder %s48, 5
      %p447 = por %p445, %p446
      %p449 = scmp.ne.s32.totalorder %s432, %s448
      %p450 = scmp.eq.s32.totalorder %s48, 0
      %p451 = por %p449, %p450
      %s452 = ssub.s32 %s49, %s61
      %p453 = scmp.eq.s32.totalorder %s452, 0
      %s455 = sadd.s32 %s454, 1
      %s456 = scalar_select %p453, %s454, %s455
      %p459 = pneg %p453
      %p460 = scmp.eq.s32.totalorder %s42, 5
      %p461 = por %p459, %p460
      %p462 = scmp.ne.s32.totalorder %s454, %s457
      %p463 = scmp.eq.s32.totalorder %s42, 0
      %p464 = por %p462, %p463
      %p465 = scmp.ne.s32.totalorder %s454, %s457
      %p466 = scmp.eq.s32.totalorder %s47, 5
      %p467 = por %p465, %p466
      %p468 = scmp.ne.s32.totalorder %s457, %s458
      %p469 = scmp.eq.s32.totalorder %s47, 0
      %p470 = por %p468, %p469
      %p471 = scmp.ne.s32.totalorder %s457, %s458
      %p472 = scmp.eq.s32.totalorder %s48, 5
      %p473 = por %p471, %p472
      %p475 = scmp.ne.s32.totalorder %s458, %s474
      %p476 = scmp.eq.s32.totalorder %s48, 0
      %p477 = por %p475, %p476
      %s478 = ssub.s32 %s49, %s61
      %p479 = scmp.eq.s32.totalorder %s478, 0
      %s481 = sadd.s32 %s480, 1
      %s482 = scalar_select %p479, %s480, %s481
      %p485 = pneg %p479
      %p486 = scmp.eq.s32.totalorder %s42, 5
      %p487 = por %p485, %p486
      %p488 = scmp.ne.s32.totalorder %s480, %s483
      %p489 = scmp.eq.s32.totalorder %s42, 0
      %p490 = por %p488, %p489
      %p491 = scmp.ne.s32.totalorder %s480, %s483
      %p492 = scmp.eq.s32.totalorder %s47, 5
      %p493 = por %p491, %p492
      %p494 = scmp.ne.s32.totalorder %s483, %s484
      %p495 = scmp.eq.s32.totalorder %s47, 0
      %p496 = por %p494, %p495
      %p497 = scmp.ne.s32.totalorder %s483, %s484
      %p498 = scmp.eq.s32.totalorder %s48, 5
      %p499 = por %p497, %p498
      %p501 = scmp.ne.s32.totalorder %s484, %s500
      %p502 = scmp.eq.s32.totalorder %s48, 0
      %p503 = por %p501, %p502
      %p504 = scmp.le.s32.totalorder 1, %s42
      %p505 = scmp.lt.s32.totalorder %s42, 7
      %p506 = pnand %p504, %p505
      %p507 = pneg %p506
      // Predicated region
      $region9: #{tpu_custom_call.1} parent=5 // pred_check
        _
      $region10: #{tpu_custom_call.1} parent=5 // pred_check_branch
        %509 = sbr.rel (%p506) target = $region12
      $region11: #{tpu_custom_call.1} parent=5 // pred_region
        %s510 = ssub.s32 %s42, 1
      $region12: #{tpu_custom_call.1} parent=5 // pred_fallthru
        _
      %p511 = scmp.lt.s32.totalorder %s42, 6
      // Predicated region
      $region13: #{tpu_custom_call.1} parent=5 // pred_check
        %p512 = pneg %p511
      $region14: #{tpu_custom_call.1} parent=5 // pred_check_branch
        %514 = sbr.rel (%p512) target = $region16
      $region15: #{tpu_custom_call.1} parent=5 // pred_region
        // Predicated region
        $region17: #{tpu_custom_call.1} parent=15 // pred_check
          %p515 = pneg %p78
        $region18: #{tpu_custom_call.1} parent=15 // pred_check_branch
          %517 = sbr.rel (%p515) target = $region20
        $region19: #{tpu_custom_call.1} parent=15 // pred_region
          %s518 = smul.u32 %s49, 3
          %s519 = sadd.s32 %s518, %s50
          %p520 = scmp.lt.s32.totalorder %s519, 5
          %s521 = scalar_select %p520, %s519, 5
          %s522 = smul.addr %s521, 2
          %s523 = smul.addr %s522, 8
          %s524 = scalar_lea.vmem %s0, %s523
          %s525 = smul.u32 %s49, 3
          %s526 = sadd.s32 %s525, %s50
        $region20: #{tpu_custom_call.1} parent=15 // pred_fallthru
          _
        // Predicated region
        $region21: #{tpu_custom_call.1} parent=15 // pred_check
          %p527 = pneg %p108
        $region22: #{tpu_custom_call.1} parent=15 // pred_check_branch
          %529 = sbr.rel (%p527) target = $region24
        $region23: #{tpu_custom_call.1} parent=15 // pred_region
          %s530 = sand.u32 %s98, 1
          %s531 = scalar_lea.sflag [#allocation5], %s530
          %s532 = sand.u32 %s98, 1
          %s533 = smul.addr %s532, 16
          %s534 = scalar_lea.vmem [#allocation4], %s533
          %s535 = smul.u32 %s49, 3
          %s536 = sadd.s32 %s535, %s50
          %538 = vsyncadd %s531, 0
          %s539 = smul.addr %s536, 2
          %s540 = smul.addr %s539, 8
          %s541 = scalar_lea.hbm %s1, %s540
          %s543 = sshll.u32 %s541, 4
          %s544 = int_to_ptr.hbm [resolvable:$true] %s543
          %s545 = sshll.u32 %s534, 4
          %s546 = int_to_ptr.vmem [resolvable:$true] %s545
          %548 = dma.hbm_to_vmem [thread:$0]  %s544, 256, %s546, %s531
        $region24: #{tpu_custom_call.1} parent=15 // pred_fallthru
          _
        // Predicated region
        $region25: #{tpu_custom_call.1} parent=15 // pred_check
          %p549 = pneg %p138
        $region26: #{tpu_custom_call.1} parent=15 // pred_check_branch
          %551 = sbr.rel (%p549) target = $region28
        $region27: #{tpu_custom_call.1} parent=15 // pred_region
          %s552 = sand.u32 %s42, 1
          %s553 = scalar_lea.sflag [#allocation8], %s552
          %s554 = sand.u32 %s128, 1
          %s555 = smul.addr %s554, 16
          %s556 = scalar_lea.vmem [#allocation7], %s555
          %s557 = smul.u32 %s49, 3
          %s558 = sadd.s32 %s557, %s50
          %560 = vsyncadd %s553, 0
          %s561 = smul.addr %s558, 2
          %s562 = smul.addr %s561, 8
          %s563 = scalar_lea.hbm %s2, %s562
          %s565 = sshll.u32 %s563, 4
          %s566 = int_to_ptr.hbm [resolvable:$true] %s565
          %s567 = sshll.u32 %s556, 4
          %s568 = int_to_ptr.vmem [resolvable:$true] %s567
          %570 = dma.hbm_to_vmem [thread:$0]  %s566, 256, %s568, %s553
        $region28: #{tpu_custom_call.1} parent=15 // pred_fallthru
          _
        // Predicated region
        $region29: #{tpu_custom_call.1} parent=15 // pred_check
          %p571 = pneg %p168
        $region30: #{tpu_custom_call.1} parent=15 // pred_check_branch
          %573 = sbr.rel (%p571) target = $region32
        $region31: #{tpu_custom_call.1} parent=15 // pred_region
          %s574 = sand.u32 %s42, 1
          %s575 = scalar_lea.sflag [#allocation8], %s574
          %s576 = sand.u32 %s158, 1
          %s577 = smul.addr %s576, 16
          %s578 = scalar_lea.vmem [#allocation9], %s577
          %s579 = smul.u32 %s49, 3
          %s580 = sadd.s32 %s579, %s50
          %582 = vsyncadd %s575, 0
          %s583 = smul.addr %s580, 2
          %s584 = smul.addr %s583, 8
          %s585 = scalar_lea.hbm %s3, %s584
          %s587 = sshll.u32 %s585, 4
          %s588 = int_to_ptr.hbm [resolvable:$true] %s587
          %s589 = sshll.u32 %s578, 4
          %s590 = int_to_ptr.vmem [resolvable:$true] %s589
          %592 = dma.hbm_to_vmem [thread:$0]  %s588, 256, %s590, %s575
        $region32: #{tpu_custom_call.1} parent=15 // pred_fallthru
          _
        // Predicated region
        $region33: #{tpu_custom_call.1} parent=15 // pred_check
          %p593 = pneg %p198
        $region34: #{tpu_custom_call.1} parent=15 // pred_check_branch
          %595 = sbr.rel (%p593) target = $region36
        $region35: #{tpu_custom_call.1} parent=15 // pred_region
          %s596 = smul.u32 %s49, 3
          %s597 = sadd.s32 %s596, %s50
          %p598 = scmp.lt.s32.totalorder %s597, 5
          %s599 = scalar_select %p598, %s597, 5
          %s600 = smul.addr %s599, 8
          %s601 = scalar_lea.vmem %s4, %s600
          %s602 = smul.u32 %s49, 3
          %s603 = sadd.s32 %s602, %s50
        $region36: #{tpu_custom_call.1} parent=15 // pred_fallthru
          _
        // Predicated region
        $region37: #{tpu_custom_call.1} parent=15 // pred_check
          %p604 = pneg %p228
        $region38: #{tpu_custom_call.1} parent=15 // pred_check_branch
          %606 = sbr.rel (%p604) target = $region40
        $region39: #{tpu_custom_call.1} parent=15 // pred_region
          %s607 = sand.u32 %s42, 1
          %s608 = scalar_lea.sflag [#allocation11], %s607
          %s609 = sand.u32 %s218, 1
          %s610 = smul.addr %s609, 16
          %s611 = scalar_lea.vmem [#allocation10], %s610
          %s612 = smul.u32 %s49, 3
          %s613 = sadd.s32 %s612, %s50
          %615 = vsyncadd %s608, 0
          %s616 = smul.addr %s613, 2
          %s617 = smul.addr %s616, 8
          %s618 = scalar_lea.hbm %s5, %s617
          %s620 = sshll.u32 %s618, 4
          %s621 = int_to_ptr.hbm [resolvable:$true] %s620
          %s622 = sshll.u32 %s611, 4
          %s623 = int_to_ptr.vmem [resolvable:$true] %s622
          %625 = dma.hbm_to_vmem [thread:$0]  %s621, 256, %s623, %s608
        $region40: #{tpu_custom_call.1} parent=15 // pred_fallthru
          _
        // Predicated region
        $region41: #{tpu_custom_call.1} parent=15 // pred_check
          %p626 = pneg %p258
        $region42: #{tpu_custom_call.1} parent=15 // pred_check_branch
          %628 = sbr.rel (%p626) target = $region44
        $region43: #{tpu_custom_call.1} parent=15 // pred_region
          %s629 = sand.u32 %s42, 1
          %s630 = scalar_lea.sflag [#allocation11], %s629
          %s631 = sand.u32 %s248, 1
          %s632 = smul.addr %s631, 16
          %s633 = scalar_lea.vmem [#allocation12], %s632
          %s634 = smul.u32 %s49, 3
          %s635 = sadd.s32 %s634, %s50
          %637 = vsyncadd %s630, 0
          %s638 = smul.addr %s635, 2
          %s639 = smul.addr %s638, 8
          %s640 = scalar_lea.hbm %s6, %s639
          %s642 = sshll.u32 %s640, 4
          %s643 = int_to_ptr.hbm [resolvable:$true] %s642
          %s644 = sshll.u32 %s633, 4
          %s645 = int_to_ptr.vmem [resolvable:$true] %s644
          %647 = dma.hbm_to_vmem [thread:$0]  %s643, 256, %s645, %s630
        $region44: #{tpu_custom_call.1} parent=15 // pred_fallthru
          _
        // Predicated region
        $region45: #{tpu_custom_call.1} parent=15 // pred_check
          %p648 = pneg %p288
        $region46: #{tpu_custom_call.1} parent=15 // pred_check_branch
          %650 = sbr.rel (%p648) target = $region48
        $region47: #{tpu_custom_call.1} parent=15 // pred_region
          %s651 = sand.u32 %s42, 1
          %s652 = scalar_lea.sflag [#allocation14], %s651
          %s653 = sand.u32 %s278, 1
          %s654 = smul.addr %s653, 16
          %s655 = scalar_lea.vmem [#allocation13], %s654
          %s656 = smul.u32 %s49, 3
          %s657 = sadd.s32 %s656, %s50
          %659 = vsyncadd %s652, 0
          %s660 = smul.addr %s657, 2
          %s661 = smul.addr %s660, 8
          %s662 = scalar_lea.hbm %s7, %s661
          %s664 = sshll.u32 %s662, 4
          %s665 = int_to_ptr.hbm [resolvable:$true] %s664
          %s666 = sshll.u32 %s655, 4
          %s667 = int_to_ptr.vmem [resolvable:$true] %s666
          %669 = dma.hbm_to_vmem [thread:$0]  %s665, 256, %s667, %s652
        $region48: #{tpu_custom_call.1} parent=15 // pred_fallthru
          _
        // Predicated region
        $region49: #{tpu_custom_call.1} parent=15 // pred_check
          %p670 = pneg %p318
        $region50: #{tpu_custom_call.1} parent=15 // pred_check_branch
          %672 = sbr.rel (%p670) target = $region52
        $region51: #{tpu_custom_call.1} parent=15 // pred_region
          %s673 = sand.u32 %s42, 1
          %s674 = scalar_lea.sflag [#allocation14], %s673
          %s675 = sand.u32 %s308, 1
          %s676 = smul.addr %s675, 16
          %s677 = scalar_lea.vmem [#allocation15], %s676
          %s678 = smul.u32 %s49, 3
          %s679 = sadd.s32 %s678, %s50
          %681 = vsyncadd %s674, 0
          %s682 = smul.addr %s679, 2
          %s683 = smul.addr %s682, 8
          %s684 = scalar_lea.hbm %s8, %s683
          %s686 = sshll.u32 %s684, 4
          %s687 = int_to_ptr.hbm [resolvable:$true] %s686
          %s688 = sshll.u32 %s677, 4
          %s689 = int_to_ptr.vmem [resolvable:$true] %s688
          %691 = dma.hbm_to_vmem [thread:$0]  %s687, 256, %s689, %s674
        $region52: #{tpu_custom_call.1} parent=15 // pred_fallthru
          _
        // Predicated region
        $region53: #{tpu_custom_call.1} parent=15 // pred_check
          %p692 = pneg %p348
        $region54: #{tpu_custom_call.1} parent=15 // pred_check_branch
          %694 = sbr.rel (%p692) target = $region56
        $region55: #{tpu_custom_call.1} parent=15 // pred_region
          %s695 = sand.u32 %s42, 1
          %s696 = scalar_lea.sflag [#allocation17], %s695
          %s697 = sand.u32 %s338, 1
          %s698 = smul.addr %s697, 16
          %s699 = scalar_lea.vmem [#allocation16], %s698
          %s700 = smul.u32 %s49, 3
          %s701 = sadd.s32 %s700, %s50
          %703 = vsyncadd %s696, 0
          %s704 = smul.addr %s701, 2
          %s705 = smul.addr %s704, 8
          %s706 = scalar_lea.hbm %s9, %s705
          %s708 = sshll.u32 %s706, 4
          %s709 = int_to_ptr.hbm [resolvable:$true] %s708
          %s710 = sshll.u32 %s699, 4
          %s711 = int_to_ptr.vmem [resolvable:$true] %s710
          %713 = dma.hbm_to_vmem [thread:$0]  %s709, 256, %s711, %s696
        $region56: #{tpu_custom_call.1} parent=15 // pred_fallthru
          _
        // Predicated region
        $region57: #{tpu_custom_call.1} parent=15 // pred_check
          %p714 = pneg %p378
        $region58: #{tpu_custom_call.1} parent=15 // pred_check_branch
          %716 = sbr.rel (%p714) target = $region60
        $region59: #{tpu_custom_call.1} parent=15 // pred_region
          %s717 = sand.u32 %s42, 1
          %s718 = scalar_lea.sflag [#allocation17], %s717
          %s719 = sand.u32 %s368, 1
          %s720 = smul.addr %s719, 16
          %s721 = scalar_lea.vmem [#allocation18], %s720
          %s722 = smul.u32 %s49, 3
          %s723 = sadd.s32 %s722, %s50
          %725 = vsyncadd %s718, 0
          %s726 = smul.addr %s723, 2
          %s727 = smul.addr %s726, 8
          %s728 = scalar_lea.hbm %s10, %s727
          %s730 = sshll.u32 %s728, 4
          %s731 = int_to_ptr.hbm [resolvable:$true] %s730
          %s732 = sshll.u32 %s721, 4
          %s733 = int_to_ptr.vmem [resolvable:$true] %s732
          %735 = dma.hbm_to_vmem [thread:$0]  %s731, 256, %s733, %s718
        $region60: #{tpu_custom_call.1} parent=15 // pred_fallthru
          _
        // Predicated region
        $region61: #{tpu_custom_call.1} parent=15 // pred_check
          %p736 = pneg %p408
        $region62: #{tpu_custom_call.1} parent=15 // pred_check_branch
          %738 = sbr.rel (%p736) target = $region64
        $region63: #{tpu_custom_call.1} parent=15 // pred_region
          %s739 = smul.u32 %s49, 3
          %s740 = sadd.s32 %s739, %s50
          %p741 = scmp.lt.s32.totalorder %s740, 5
          %s742 = scalar_select %p741, %s740, 5
          %s743 = smul.addr %s742, 8
          %s744 = scalar_lea.vmem %s11, %s743
          %s745 = smul.u32 %s49, 3
          %s746 = sadd.s32 %s745, %s50
        $region64: #{tpu_custom_call.1} parent=15 // pred_fallthru
          _
        // Predicated region
        $region65: #{tpu_custom_call.1} parent=15 // pred_check
          %p747 = pneg %p438
        $region66: #{tpu_custom_call.1} parent=15 // pred_check_branch
          %749 = sbr.rel (%p747) target = $region68
        $region67: #{tpu_custom_call.1} parent=15 // pred_region
          %s750 = smul.u32 %s49, 3
          %s751 = sadd.s32 %s750, %s50
          %p752 = scmp.lt.s32.totalorder %s751, 5
          %s753 = scalar_select %p752, %s751, 5
          %s754 = smul.addr %s753, 8
          %s755 = scalar_lea.vmem %s12, %s754
          %s756 = smul.u32 %s49, 3
          %s757 = sadd.s32 %s756, %s50
        $region68: #{tpu_custom_call.1} parent=15 // pred_fallthru
          _
      $region16: #{tpu_custom_call.1} parent=5 // pred_fallthru
        _
      %p758 = scmp.le.s32.totalorder 1, %s42
      %p759 = scmp.lt.s32.totalorder %s42, 7
      %p760 = pnand %p758, %p759
      %p761 = pneg %p760
      // Predicated region
      $region69: #{tpu_custom_call.1} parent=5 // pred_check
        _
      $region70: #{tpu_custom_call.1} parent=5 // pred_check_branch
        %763 = sbr.rel (%p760) target = $region72
      $region71: #{tpu_custom_call.1} parent=5 // pred_region
        %s764 = ssub.s32 %s42, 1
        %s765 = sand.u32 %s101, 1
        %s766 = scalar_lea.sflag [#allocation5], %s765
        %s767 = sand.u32 %s101, 1
        %s768 = smul.addr %s767, 16
        %s769 = scalar_lea.vmem [#allocation4], %s768
        // Predicated region
        $region73: #{tpu_custom_call.1} parent=71 // pred_check
          %p770 = pneg %p114
        $region74: #{tpu_custom_call.1} parent=71 // pred_check_branch
          %772 = sbr.rel (%p770) target = $region76
        $region75: #{tpu_custom_call.1} parent=71 // pred_region
          %774 = dma.done %s766, 256
        $region76: #{tpu_custom_call.1} parent=71 // pred_fallthru
          _
        %s775 = sand.u32 %s47, 1
        %s776 = scalar_lea.sflag [#allocation8], %s775
        %s777 = sand.u32 %s131, 1
        %s778 = smul.addr %s777, 16
        %s779 = scalar_lea.vmem [#allocation7], %s778
        // Predicated region
        $region77: #{tpu_custom_call.1} parent=71 // pred_check
          %p780 = pneg %p144
        $region78: #{tpu_custom_call.1} parent=71 // pred_check_branch
          %782 = sbr.rel (%p780) target = $region80
        $region79: #{tpu_custom_call.1} parent=71 // pred_region
          %784 = dma.done %s776, 256
        $region80: #{tpu_custom_call.1} parent=71 // pred_fallthru
          _
        %s785 = sand.u32 %s47, 1
        %s786 = scalar_lea.sflag [#allocation8], %s785
        %s787 = sand.u32 %s161, 1
        %s788 = smul.addr %s787, 16
        %s789 = scalar_lea.vmem [#allocation9], %s788
        // Predicated region
        $region81: #{tpu_custom_call.1} parent=71 // pred_check
          %p790 = pneg %p174
        $region82: #{tpu_custom_call.1} parent=71 // pred_check_branch
          %792 = sbr.rel (%p790) target = $region84
        $region83: #{tpu_custom_call.1} parent=71 // pred_region
          %794 = dma.done %s786, 256
        $region84: #{tpu_custom_call.1} parent=71 // pred_fallthru
          _
        %s795 = sand.u32 %s47, 1
        %s796 = scalar_lea.sflag [#allocation11], %s795
        %s797 = sand.u32 %s221, 1
        %s798 = smul.addr %s797, 16
        %s799 = scalar_lea.vmem [#allocation10], %s798
        // Predicated region
        $region85: #{tpu_custom_call.1} parent=71 // pred_check
          %p800 = pneg %p234
        $region86: #{tpu_custom_call.1} parent=71 // pred_check_branch
          %802 = sbr.rel (%p800) target = $region88
        $region87: #{tpu_custom_call.1} parent=71 // pred_region
          %804 = dma.done %s796, 256
        $region88: #{tpu_custom_call.1} parent=71 // pred_fallthru
          _
        %s805 = sand.u32 %s47, 1
        %s806 = scalar_lea.sflag [#allocation11], %s805
        %s807 = sand.u32 %s251, 1
        %s808 = smul.addr %s807, 16
        %s809 = scalar_lea.vmem [#allocation12], %s808
        // Predicated region
        $region89: #{tpu_custom_call.1} parent=71 // pred_check
          %p810 = pneg %p264
        $region90: #{tpu_custom_call.1} parent=71 // pred_check_branch
          %812 = sbr.rel (%p810) target = $region92
        $region91: #{tpu_custom_call.1} parent=71 // pred_region
          %814 = dma.done %s806, 256
        $region92: #{tpu_custom_call.1} parent=71 // pred_fallthru
          _
        %s815 = sand.u32 %s47, 1
        %s816 = scalar_lea.sflag [#allocation14], %s815
        %s817 = sand.u32 %s281, 1
        %s818 = smul.addr %s817, 16
        %s819 = scalar_lea.vmem [#allocation13], %s818
        // Predicated region
        $region93: #{tpu_custom_call.1} parent=71 // pred_check
          %p820 = pneg %p294
        $region94: #{tpu_custom_call.1} parent=71 // pred_check_branch
          %822 = sbr.rel (%p820) target = $region96
        $region95: #{tpu_custom_call.1} parent=71 // pred_region
          %824 = dma.done %s816, 256
        $region96: #{tpu_custom_call.1} parent=71 // pred_fallthru
          _
        %s825 = sand.u32 %s47, 1
        %s826 = scalar_lea.sflag [#allocation14], %s825
        %s827 = sand.u32 %s311, 1
        %s828 = smul.addr %s827, 16
        %s829 = scalar_lea.vmem [#allocation15], %s828
        // Predicated region
        $region97: #{tpu_custom_call.1} parent=71 // pred_check
          %p830 = pneg %p324
        $region98: #{tpu_custom_call.1} parent=71 // pred_check_branch
          %832 = sbr.rel (%p830) target = $region100
        $region99: #{tpu_custom_call.1} parent=71 // pred_region
          %834 = dma.done %s826, 256
        $region100: #{tpu_custom_call.1} parent=71 // pred_fallthru
          _
        %s835 = sand.u32 %s47, 1
        %s836 = scalar_lea.sflag [#allocation17], %s835
        %s837 = sand.u32 %s341, 1
        %s838 = smul.addr %s837, 16
        %s839 = scalar_lea.vmem [#allocation16], %s838
        // Predicated region
        $region101: #{tpu_custom_call.1} parent=71 // pred_check
          %p840 = pneg %p354
        $region102: #{tpu_custom_call.1} parent=71 // pred_check_branch
          %842 = sbr.rel (%p840) target = $region104
        $region103: #{tpu_custom_call.1} parent=71 // pred_region
          %844 = dma.done %s836, 256
        $region104: #{tpu_custom_call.1} parent=71 // pred_fallthru
          _
        %s845 = sand.u32 %s47, 1
        %s846 = scalar_lea.sflag [#allocation17], %s845
        %s847 = sand.u32 %s371, 1
        %s848 = smul.addr %s847, 16
        %s849 = scalar_lea.vmem [#allocation18], %s848
        // Predicated region
        $region105: #{tpu_custom_call.1} parent=71 // pred_check
          %p850 = pneg %p384
        $region106: #{tpu_custom_call.1} parent=71 // pred_check_branch
          %852 = sbr.rel (%p850) target = $region108
        $region107: #{tpu_custom_call.1} parent=71 // pred_region
          %854 = dma.done %s846, 256
        $region108: #{tpu_custom_call.1} parent=71 // pred_fallthru
          _
        %s855 = smul.u32 %s51, 3
        %s856 = sadd.s32 %s855, %s52
        %p857 = scmp.lt.s32.totalorder %s856, 5
        %s858 = scalar_select %p857, %s856, 5
        %s859 = smul.addr %s858, 2
        %s860 = smul.addr %s859, 8
        %s861 = scalar_lea.vmem %s0, %s860
        %p862 = pneg %p84
        %p863 = pneg %p81
        %s864 = sand.u32 %s101, 1
        %s865 = scalar_lea.sflag [#allocation5], %s864
        %s866 = sand.u32 %s101, 1
        %s867 = smul.addr %s866, 16
        %s868 = scalar_lea.vmem [#allocation4], %s867
        %p869 = pneg %p114
        %p870 = pneg %p111
        %s871 = sand.u32 %s47, 1
        %s872 = scalar_lea.sflag [#allocation8], %s871
        %s873 = sand.u32 %s131, 1
        %s874 = smul.addr %s873, 16
        %s875 = scalar_lea.vmem [#allocation7], %s874
        %p876 = pneg %p144
        %p877 = pneg %p141
        %s878 = sand.u32 %s47, 1
        %s879 = scalar_lea.sflag [#allocation8], %s878
        %s880 = sand.u32 %s161, 1
        %s881 = smul.addr %s880, 16
        %s882 = scalar_lea.vmem [#allocation9], %s881
        %p883 = pneg %p174
        %p884 = pneg %p171
        %s885 = smul.u32 %s51, 3
        %s886 = sadd.s32 %s885, %s52
        %p887 = scmp.lt.s32.totalorder %s886, 5
        %s888 = scalar_select %p887, %s886, 5
        %s889 = smul.addr %s888, 8
        %s890 = scalar_lea.vmem %s4, %s889
        %p891 = pneg %p204
        %p892 = pneg %p201
        %s893 = sand.u32 %s47, 1
        %s894 = scalar_lea.sflag [#allocation11], %s893
        %s895 = sand.u32 %s221, 1
        %s896 = smul.addr %s895, 16
        %s897 = scalar_lea.vmem [#allocation10], %s896
        %p898 = pneg %p234
        %p899 = pneg %p231
        %s900 = sand.u32 %s47, 1
        %s901 = scalar_lea.sflag [#allocation11], %s900
        %s902 = sand.u32 %s251, 1
        %s903 = smul.addr %s902, 16
        %s904 = scalar_lea.vmem [#allocation12], %s903
        %p905 = pneg %p264
        %p906 = pneg %p261
        %s907 = sand.u32 %s47, 1
        %s908 = scalar_lea.sflag [#allocation14], %s907
        %s909 = sand.u32 %s281, 1
        %s910 = smul.addr %s909, 16
        %s911 = scalar_lea.vmem [#allocation13], %s910
        %p912 = pneg %p294
        %p913 = pneg %p291
        %s914 = sand.u32 %s47, 1
        %s915 = scalar_lea.sflag [#allocation14], %s914
        %s916 = sand.u32 %s311, 1
        %s917 = smul.addr %s916, 16
        %s918 = scalar_lea.vmem [#allocation15], %s917
        %p919 = pneg %p324
        %p920 = pneg %p321
        %s921 = sand.u32 %s47, 1
        %s922 = scalar_lea.sflag [#allocation17], %s921
        %s923 = sand.u32 %s341, 1
        %s924 = smul.addr %s923, 16
        %s925 = scalar_lea.vmem [#allocation16], %s924
        %p926 = pneg %p354
        %p927 = pneg %p351
        %s928 = sand.u32 %s47, 1
        %s929 = scalar_lea.sflag [#allocation17], %s928
        %s930 = sand.u32 %s371, 1
        %s931 = smul.addr %s930, 16
        %s932 = scalar_lea.vmem [#allocation18], %s931
        %p933 = pneg %p384
        %p934 = pneg %p381
        %s935 = smul.u32 %s51, 3
        %s936 = sadd.s32 %s935, %s52
        %p937 = scmp.lt.s32.totalorder %s936, 5
        %s938 = scalar_select %p937, %s936, 5
        %s939 = smul.addr %s938, 8
        %s940 = scalar_lea.vmem %s11, %s939
        %p941 = pneg %p414
        %p942 = pneg %p411
        %s943 = smul.u32 %s51, 3
        %s944 = sadd.s32 %s943, %s52
        %p945 = scmp.lt.s32.totalorder %s944, 5
        %s946 = scalar_select %p945, %s944, 5
        %s947 = smul.addr %s946, 8
        %s948 = scalar_lea.vmem %s12, %s947
        %p949 = pneg %p444
        %p950 = pneg %p441
        %p951 = pneg %p470
        %p952 = pneg %p467
        %s953 = sand.u32 %s457, 1
        %s954 = scalar_lea.sflag [#allocation6], %s953
        %s955 = sand.u32 %s457, 1
        %s956 = smul.addr %s955, 8
        %s957 = scalar_lea.vmem [#allocation19], %s956
        %p958 = pneg %p496
        %p959 = pneg %p493
        %s960 = sand.u32 %s483, 1
        %s961 = scalar_lea.sflag [#allocation21], %s960
        %s962 = sand.u32 %s483, 1
        %s963 = smul.addr %s962, 8
        %s964 = scalar_lea.vmem [#allocation20], %s963
        %s965 = smul.u32 %s51, 3
        %s966 = sadd.s32 %s965, %s52
        %p967 = scmp.lt.s32.totalorder %s966, 5
        %s968 = scalar_select %p967, %s966, 5
        %s969 = smul.addr %s968, 2
        %s970 = smul.addr %s969, 8
        %s971 = scalar_lea.vmem %s0, %s970
        %s972 = smul.u32 %s51, 3
        %s973 = sadd.s32 %s972, %s52
        %s974 = smul.u32 %s51, 3
        %s975 = sadd.s32 %s974, %s52
        %s976 = smul.u32 %s51, 3
        %s977 = sadd.s32 %s976, %s52
        %s978 = smul.u32 %s51, 3
        %s979 = sadd.s32 %s978, %s52
        %s980 = smul.u32 %s51, 3
        %s981 = sadd.s32 %s980, %s52
        %p982 = scmp.lt.s32.totalorder %s981, 5
        %s983 = scalar_select %p982, %s981, 5
        %s984 = smul.addr %s983, 8
        %s985 = scalar_lea.vmem %s4, %s984
        %s986 = smul.u32 %s51, 3
        %s987 = sadd.s32 %s986, %s52
        %s988 = smul.u32 %s51, 3
        %s989 = sadd.s32 %s988, %s52
        %s990 = smul.u32 %s51, 3
        %s991 = sadd.s32 %s990, %s52
        %s992 = smul.u32 %s51, 3
        %s993 = sadd.s32 %s992, %s52
        %s994 = smul.u32 %s51, 3
        %s995 = sadd.s32 %s994, %s52
        %s996 = smul.u32 %s51, 3
        %s997 = sadd.s32 %s996, %s52
        %s998 = smul.u32 %s51, 3
        %s999 = sadd.s32 %s998, %s52
        %s1000 = smul.u32 %s51, 3
        %s1001 = sadd.s32 %s1000, %s52
        %p1002 = scmp.lt.s32.totalorder %s1001, 5
        %s1003 = scalar_select %p1002, %s1001, 5
        %s1004 = smul.addr %s1003, 8
        %s1005 = scalar_lea.vmem %s11, %s1004
        %s1006 = smul.u32 %s51, 3
        %s1007 = sadd.s32 %s1006, %s52
        %s1008 = smul.u32 %s51, 3
        %s1009 = sadd.s32 %s1008, %s52
        %p1010 = scmp.lt.s32.totalorder %s1009, 5
        %s1011 = scalar_select %p1010, %s1009, 5
        %s1012 = smul.addr %s1011, 8
        %s1013 = scalar_lea.vmem %s12, %s1012
        %s1014 = smul.u32 %s51, 3
        %s1015 = sadd.s32 %s1014, %s52
        %p1016 = scmp.eq.s32.totalorder %s52, 0
        // Predicated region
        $region109: #{tpu_custom_call.1} parent=71 // pred_check
          %p1017 = pneg %p1016
        $region110: #{tpu_custom_call.1} parent=71 // pred_check_branch
          %1019 = sbr.rel (%p1017) target = $region112
        $region111: #{tpu_custom_call.1} parent=71 // pred_region
          %1020 = vst [vmem:[#allocation2] sm:$0xff] 0.0
          %1021 = vst [vmem:[#allocation2 + $0x8] sm:$0xff] 0.0
          %1022 = vst [vmem:[#allocation3] sm:$0xff] 0.0
          %1023 = vst [vmem:[#allocation3 + $0x8] sm:$0xff] 0.0
        $region112: #{tpu_custom_call.1} parent=71 // pred_fallthru
          _
        %v1024 = vld [vmem:[#allocation2] sm:$0xff]
        %v1025 = vld [vmem:[#allocation2 + $0x8] sm:$0xff]
        %v1026 = vld [vmem:[%s971] sm:$0xff]
        %v1027 = vld [vmem:[%s971 + $0x8] sm:$0xff]
        %v1028 = vld [vmem:[%s789] sm:$0xff]
        %v1029 = vld [vmem:[%s789 + $0x8] sm:$0xff]
        %v1030 = vsub.f32 %v1026, %v1028
        %v1031 = vsub.f32 %v1027, %v1029
        %v1032 = vld [vmem:[%s985] sm:$0xff]
        %1034 = vset.pattern.permute.xlu0 0
        %1035 = vperm.xlu0 %1034, %v1032
        %v1036 = vpop.permute.xlu0 %1035
        %v1038 = vmul.f32 %v1030, %v1036
        %v1039 = vmul.f32 %v1031, %v1036
        %v1040 = vmul.f32 %v1038, %v1038
        %v1041 = vmul.f32 %v1039, %v1039
        %v1042 = vld [vmem:[%s769] sm:$0xff]
        %v1043 = vld [vmem:[%s769 + $0x8] sm:$0xff]
        %v1044 = vsub.f32 %v1042, %v1028
        %v1045 = vsub.f32 %v1043, %v1029
        %v1046 = vmul.f32 %v1044, %v1036
        %v1047 = vmul.f32 %v1045, %v1036
        %v1048 = vmul.f32 %v1046, %v1046
        %v1049 = vmul.f32 %v1047, %v1047
        %v1050 = vadd.f32 %v1040, %v1048
        %v1051 = vadd.f32 %v1041, %v1049
        %v1052 = vld [vmem:[%s779] sm:$0xff]
        %v1053 = vld [vmem:[%s779 + $0x8] sm:$0xff]
        %v1054 = vsub.f32 %v1052, %v1028
        %v1055 = vsub.f32 %v1053, %v1029
        %v1056 = vmul.f32 %v1054, %v1036
        %v1057 = vmul.f32 %v1055, %v1036
        %v1058 = vmul.f32 %v1056, %v1056
        %v1059 = vmul.f32 %v1057, %v1057
        %v1060 = vadd.f32 %v1050, %v1058
        %v1061 = vadd.f32 %v1051, %v1059
        %v1062 = vadd.f32 %v1024, %v1060
        %v1063 = vadd.f32 %v1025, %v1061
        %1064 = vst [vmem:[#allocation2] sm:$0xff] %v1062
        %1065 = vst [vmem:[#allocation2 + $0x8] sm:$0xff] %v1063
        %v1066 = vld [vmem:[#allocation3] sm:$0xff]
        %v1067 = vld [vmem:[#allocation3 + $0x8] sm:$0xff]
        %v1068 = vld [vmem:[%s799] sm:$0xff]
        %v1069 = vld [vmem:[%s799 + $0x8] sm:$0xff]
        %v1070 = vld [vmem:[%s829] sm:$0xff]
        %v1071 = vld [vmem:[%s829 + $0x8] sm:$0xff]
        %v1072 = vsub.f32 %v1068, %v1070
        %v1073 = vsub.f32 %v1069, %v1071
        %v1074 = vld [vmem:[%s1005] sm:$0xff]
        %1076 = vset.pattern.permute.xlu0 0
        %1077 = vperm.xlu0 %1076, %v1074
        %v1078 = vpop.permute.xlu0 %1077
        %v1080 = vmul.f32 %v1072, %v1078
        %v1081 = vmul.f32 %v1073, %v1078
        %v1082 = vmul.f32 %v1080, %v1080
        %v1083 = vmul.f32 %v1081, %v1081
        %v1084 = vld [vmem:[%s809] sm:$0xff]
        %v1085 = vld [vmem:[%s809 + $0x8] sm:$0xff]
        %v1086 = vld [vmem:[%s839] sm:$0xff]
        %v1087 = vld [vmem:[%s839 + $0x8] sm:$0xff]
        %v1088 = vsub.f32 %v1084, %v1086
        %v1089 = vsub.f32 %v1085, %v1087
        %v1090 = vmul.f32 %v1088, %v1078
        %v1091 = vmul.f32 %v1089, %v1078
        %v1092 = vmul.f32 %v1090, %v1090
        %v1093 = vmul.f32 %v1091, %v1091
        %v1094 = vadd.f32 %v1082, %v1092
        %v1095 = vadd.f32 %v1083, %v1093
        %v1096 = vld [vmem:[%s819] sm:$0xff]
        %v1097 = vld [vmem:[%s819 + $0x8] sm:$0xff]
        %v1098 = vld [vmem:[%s849] sm:$0xff]
        %v1099 = vld [vmem:[%s849 + $0x8] sm:$0xff]
        %v1100 = vsub.f32 %v1096, %v1098
        %v1101 = vsub.f32 %v1097, %v1099
        %v1102 = vld [vmem:[%s1013] sm:$0xff]
        %1104 = vset.pattern.permute.xlu0 0
        %1105 = vperm.xlu0 %1104, %v1102
        %v1106 = vpop.permute.xlu0 %1105
        %v1108 = vmul.f32 %v1100, %v1106
        %v1109 = vmul.f32 %v1101, %v1106
        %v1110 = vmul.f32 %v1108, %v1108
        %v1111 = vmul.f32 %v1109, %v1109
        %v1112 = vadd.f32 %v1094, %v1110
        %v1113 = vadd.f32 %v1095, %v1111
        %v1114 = vadd.f32 %v1066, %v1112
        %v1115 = vadd.f32 %v1067, %v1113
        %1116 = vst [vmem:[#allocation3] sm:$0xff] %v1114
        %1117 = vst [vmem:[#allocation3 + $0x8] sm:$0xff] %v1115
        %p1118 = scmp.eq.s32.totalorder %s52, 2
        // Predicated region
        $region113: #{tpu_custom_call.1} parent=71 // pred_check
          %p1119 = pneg %p1118
        $region114: #{tpu_custom_call.1} parent=71 // pred_check_branch
          %1121 = sbr.rel (%p1119) target = $region116
        $region115: #{tpu_custom_call.1} parent=71 // pred_region
          %v1122 = vld [vmem:[#allocation2] sm:$0xff]
          %v1123 = vld [vmem:[#allocation2 + $0x8] sm:$0xff]
          %v1124 = vadd.f32 %v1122, %v1123
          %1125 = vadd.xlane.f32.xlu0 %v1124
          %v1126 = vpop.xlane.xlu0 %1125
          %v1127 = vrot.slane %v1126, 4
          %v1128 = vadd.f32 %v1126, %v1127
          %v1129 = vrot.slane %v1128, 2
          %v1130 = vadd.f32 %v1128, %v1129
          %v1131 = vrot.slane %v1130, 1
          %v1132 = vadd.f32 %v1130, %v1131
          %s1133 = vtos %v1132
          %v1134 = vstv %s1133
          %1135 = vst [vmem:[%s957] sm:$0xff] %v1134
          %v1136 = vld [vmem:[#allocation3] sm:$0xff]
          %v1137 = vld [vmem:[#allocation3 + $0x8] sm:$0xff]
          %v1138 = vadd.f32 %v1136, %v1137
          %1139 = vadd.xlane.f32.xlu0 %v1138
          %v1140 = vpop.xlane.xlu0 %1139
          %v1141 = vrot.slane %v1140, 4
          %v1142 = vadd.f32 %v1140, %v1141
          %v1143 = vrot.slane %v1142, 2
          %v1144 = vadd.f32 %v1142, %v1143
          %v1145 = vrot.slane %v1144, 1
          %v1146 = vadd.f32 %v1144, %v1145
          %s1147 = vtos %v1146
          %v1148 = vstv %s1147
          %1149 = vst [vmem:[%s964] sm:$0xff] %v1148
        $region116: #{tpu_custom_call.1} parent=71 // pred_fallthru
          _
        %s1150 = sand.u32 %s457, 1
        %s1151 = scalar_lea.sflag [#allocation6], %s1150
        %s1152 = sand.u32 %s457, 1
        %s1153 = smul.addr %s1152, 8
        %s1154 = scalar_lea.vmem [#allocation19], %s1153
        %s1155 = sand.u32 %s483, 1
        %s1156 = scalar_lea.sflag [#allocation21], %s1155
        %s1157 = sand.u32 %s483, 1
        %s1158 = smul.addr %s1157, 8
        %s1159 = scalar_lea.vmem [#allocation20], %s1158
        // Predicated region
        $region117: #{tpu_custom_call.1} parent=71 // pred_check
          %p1160 = pneg %p467
        $region118: #{tpu_custom_call.1} parent=71 // pred_check_branch
          %1162 = sbr.rel (%p1160) target = $region120
        $region119: #{tpu_custom_call.1} parent=71 // pred_region
          %1164 = vsyncadd %s1151, 0
          %s1165 = smul.addr %s51, 8
          %s1166 = scalar_lea.hbm %s13, %s1165
          %s1168 = sshll.u32 %s1154, 4
          %s1169 = int_to_ptr.vmem [resolvable:$true] %s1168
          %s1170 = sshll.u32 %s1166, 4
          %s1171 = int_to_ptr.hbm [resolvable:$true] %s1170
          %1173 = dma.vmem_to_hbm [thread:$0]  %s1169, 128, %s1171, %s1151
        $region120: #{tpu_custom_call.1} parent=71 // pred_fallthru
          _
        // Predicated region
        $region121: #{tpu_custom_call.1} parent=71 // pred_check
          %p1174 = pneg %p493
        $region122: #{tpu_custom_call.1} parent=71 // pred_check_branch
          %1176 = sbr.rel (%p1174) target = $region124
        $region123: #{tpu_custom_call.1} parent=71 // pred_region
          %1178 = vsyncadd %s1156, 0
          %s1179 = smul.addr %s51, 8
          %s1180 = scalar_lea.hbm %s14, %s1179
          %s1182 = sshll.u32 %s1159, 4
          %s1183 = int_to_ptr.vmem [resolvable:$true] %s1182
          %s1184 = sshll.u32 %s1180, 4
          %s1185 = int_to_ptr.hbm [resolvable:$true] %s1184
          %1187 = dma.vmem_to_hbm [thread:$0]  %s1183, 128, %s1185, %s1156
        $region124: #{tpu_custom_call.1} parent=71 // pred_fallthru
          _
      $region72: #{tpu_custom_call.1} parent=5 // pred_fallthru
        _
      %p1188 = scmp.le.s32.totalorder 2, %s42
      // Predicated region
      $region125: #{tpu_custom_call.1} parent=5 // pred_check
        %p1189 = pneg %p1188
      $region126: #{tpu_custom_call.1} parent=5 // pred_check_branch
        %1191 = sbr.rel (%p1189) target = $region128
      $region127: #{tpu_custom_call.1} parent=5 // pred_region
        %s1192 = ssub.s32 %s42, 2
        // Predicated region
        $region129: #{tpu_custom_call.1} parent=127 // pred_check
          %p1193 = pneg %p473
        $region130: #{tpu_custom_call.1} parent=127 // pred_check_branch
          %1195 = sbr.rel (%p1193) target = $region132
        $region131: #{tpu_custom_call.1} parent=127 // pred_region
          %s1196 = sand.u32 %s458, 1
          %s1197 = scalar_lea.sflag [#allocation6], %s1196
          %s1198 = sand.u32 %s458, 1
          %s1199 = smul.addr %s1198, 8
          %s1200 = scalar_lea.vmem [#allocation19], %s1199
          %1202 = dma.done %s1197, 128
        $region132: #{tpu_custom_call.1} parent=127 // pred_fallthru
          _
        // Predicated region
        $region133: #{tpu_custom_call.1} parent=127 // pred_check
          %p1203 = pneg %p499
        $region134: #{tpu_custom_call.1} parent=127 // pred_check_branch
          %1205 = sbr.rel (%p1203) target = $region136
        $region135: #{tpu_custom_call.1} parent=127 // pred_region
          %s1206 = sand.u32 %s484, 1
          %s1207 = scalar_lea.sflag [#allocation21], %s1206
          %s1208 = sand.u32 %s484, 1
          %s1209 = smul.addr %s1208, 8
          %s1210 = scalar_lea.vmem [#allocation20], %s1209
          %1212 = dma.done %s1207, 128
        $region136: #{tpu_custom_call.1} parent=127 // pred_fallthru
          _
      $region128: #{tpu_custom_call.1} parent=5 // pred_fallthru
        _
    $region6: #{tpu_custom_call.1} parent=1 // loop_footer
      %s46 = sadd.s32 1, %s42
    $region7: #{tpu_custom_call.1} parent=1 // loop_footer_branch
      %41 = sbr.rel target = $region3
    $region8: #{tpu_custom_call.1} parent=1 // loop_exit
      _
    %1213 = vsyncpa [#allocation5], 1
    %s1214 = scalar_lea.sflag [#allocation5], 1
    %1215 = vsyncpa %s1214, 1
    %1216 = vsyncpa [#allocation8], 1
    %s1217 = scalar_lea.sflag [#allocation8], 1
    %1218 = vsyncpa %s1217, 1
    %1219 = vsyncpa [#allocation11], 1
    %s1220 = scalar_lea.sflag [#allocation11], 1
    %1221 = vsyncpa %s1220, 1
    %1222 = vsyncpa [#allocation14], 1
    %s1223 = scalar_lea.sflag [#allocation14], 1
    %1224 = vsyncpa %s1223, 1
    %1225 = vsyncpa [#allocation17], 1
    %s1226 = scalar_lea.sflag [#allocation17], 1
    %1227 = vsyncpa %s1226, 1
    %1228 = vsyncpa [#allocation6], 1
    %s1229 = scalar_lea.sflag [#allocation6], 1
    %1230 = vsyncpa %s1229, 1
    %1231 = vsyncpa [#allocation21], 1
    %s1232 = scalar_lea.sflag [#allocation21], 1
    %1233 = vsyncpa %s1232, 1

</llo_original>
